<compile_context>
chip_gen: v6e
topology: v6e:2x2x1
jax: 0.10.0
libtpu: 0.0.40
codegen_flags: <defaults>
</compile_context>

<pallas_src>
import jax
import jax.numpy as jnp
from jax.experimental import pallas as pl
from jax.experimental.pallas import tpu as pltpu

K = 5       # conv kernel size
PAD = 2     # 'same' padding
EPS = 1e-5  # BatchNorm2d default eps


def make_fused_conv_bn_relu_x2(N, H, W, Cin, Cout, Hp):
    """Builds the fused (conv5x5 -> BN(train) -> ReLU) x 2 pallas_call."""
    Lin = W * Cin               # lane width of layer-1 input rows
    Lout = W * Cout             # lane width of activations / output rows
    rows_p = N * Hp             # row-padded slab rows (per-image stride Hp)
    rows_out = N * H
    Rv = (N - 1) * Hp + H       # rows of the shifted-slab accumulator
    tail = Hp - H - PAD         # trailing pad rows per image (>= PAD)
    inv_m = 1.0 / float(N * H * W)

    def kernel(xp_ref, a1_ref, a2_ref, gb_ref, o_ref, y1p_ref):
        f32 = jnp.float32
        bf16 = jnp.bfloat16

        gb = gb_ref[...]                                   # (4, Lout) packed BN params
        g1, b1 = gb[0:1, :], gb[1:2, :]
        g2, b2 = gb[2:3, :], gb[3:4, :]

        # 0/1 channel projector built in-kernel (no HBM DMA):
        # proj[i, j] = 1 iff lanes i and j hold the same channel (i%C == j%C).
        li = jax.lax.broadcasted_iota(jnp.int32, (Lout, Lout), 0) % Cout
        lj = jax.lax.broadcasted_iota(jnp.int32, (Lout, Lout), 1) % Cout
        proj = (li == lj).astype(f32)                      # (Lout, Lout)

        def banded_conv(src_ref, a_ref):
            # One MXU matmul per kh tap over the WHOLE row-padded slab (batched
            # over all N images), f32 accumulation; LHS fed to the MXU as bf16.
            # Valid conv-output rows land at slab row n*Hp + h.
            acc = jnp.zeros((Rv, Lout), f32)
            for kh in range(K):
                lhs = src_ref[pl.ds(kh, Rv), :].astype(bf16)
                acc = acc + jnp.dot(lhs, a_ref[kh], preferred_element_type=f32)
            # Gather the N*H valid rows; slices are 8-aligned (Hp % 8 == 0,
            # H % 8 == 0) so this is a cheap aligned sublane copy.
            return jnp.concatenate(
                [acc[n * Hp:n * Hp + H, :] for n in range(N)], axis=0)

        def bn_relu(y, gamma_w, beta_w):
            # Training-mode BN (batch stats, biased variance) + affine + ReLU.
            # Reduce rows first (exact f32), then reduce the W lane-groups per
            # channel with the tiny projector matmul; result stays lane-wide.
            s = jnp.sum(y, axis=0, keepdims=True)                      # (1, Lout)
            mean_w = jnp.dot(s, proj, preferred_element_type=jnp.float32) * inv_m
            cent = y - mean_w
            s2 = jnp.sum(cent * cent, axis=0, keepdims=True)
            var_w = jnp.dot(s2, proj, preferred_element_type=jnp.float32) * inv_m
            scale_w = gamma_w * jax.lax.rsqrt(var_w + EPS)
            return jnp.maximum(cent * scale_w + beta_w, 0.0)

        # ---- block 1: conv1 (bias cancelled by train-mode BN) + BN1 + ReLU ----
        act1 = bn_relu(banded_conv(xp_ref, a1_ref), g1, b1)            # (N*H, Lout)

        # ---- stage act1 in VMEM, row-padded for the layer-2 taps.  Only the
        # pad rows are zeroed (not the whole scratch). ----
        zpad = jnp.zeros((PAD, Lout), f32)
        ztail = jnp.zeros((tail, Lout), f32)
        for n in range(N):
            base = n * Hp                                   # multiple of 8
            y1p_ref[pl.ds(base, PAD), :] = zpad
            y1p_ref[pl.ds(base + PAD, H), :] = act1[n * H:(n + 1) * H, :]
            y1p_ref[pl.ds(base + PAD + H, tail), :] = ztail

        # ---- block 2: conv2 + BN2 + ReLU; lane-dense (N*H, 128) store ----
        o_ref[...] = bn_relu(banded_conv(y1p_ref, a2_ref), g2, b2)

    grid_spec = pltpu.PrefetchScalarGridSpec(
        num_scalar_prefetch=0,
        grid=(1,),
        in_specs=[
            pl.BlockSpec((rows_p, Lin), lambda i: (0, 0)),       # row-padded input (f32)
            pl.BlockSpec((K, Lin, Lout), lambda i: (0, 0, 0)),   # banded W1 (bf16)
            pl.BlockSpec((K, Lout, Lout), lambda i: (0, 0, 0)),  # banded W2 (bf16)
            pl.BlockSpec((4, Lout), lambda i: (0, 0)),           # packed gamma/beta (f32)
        ],
        out_specs=pl.BlockSpec((rows_out, Lout), lambda i: (0, 0)),
        scratch_shapes=[pltpu.VMEM((rows_p, Lout), jnp.float32)],
    )
    return pl.pallas_call(
        kernel,
        out_shape=jax.ShapeDtypeStruct((rows_out, Lout), jnp.float32),
        grid_spec=grid_spec,
        compiler_params=pltpu.CompilerParams(
            dimension_semantics=("arbitrary",)),
    )


def conv_weight_to_banded(w, Wdim):
    """torch Conv2d weight (Cout, Cin, K, K) -> banded matrices (K, Wdim*Cin, Wdim*Cout).

    A[kh, win*Cin + c, wout*Cout + o] = w[o, c, kh, win + PAD - wout] when that kw
    index lies in [0, K), else 0.  One matmul of a row block of the row-padded
    input against A[kh] applies all K kw-taps of that kh at once and realizes
    the zero 'same' padding along W.
    """
    wt = jnp.transpose(w, (2, 3, 1, 0))                        # [kh, kw, c, o]
    win = jnp.arange(Wdim)[:, None]
    wout = jnp.arange(Wdim)[None, :]
    kw = win + PAD - wout                                      # (Wdim, Wdim)
    valid = ((kw >= 0) & (kw < K)).astype(w.dtype)
    kw = jnp.clip(kw, 0, K - 1)
    a = wt[:, kw, :, :] * valid[None, :, :, None, None]        # (K, Wdim, Wdim, Cin, Cout)
    a = jnp.transpose(a, (0, 1, 3, 2, 4))                      # (K, win, Cin, wout, Cout)
    return a.reshape(K, Wdim * w.shape[1], Wdim * w.shape[0])


def one_step_conv_forward(x_nchw, params):
    (w1, b1, g1, bt1, w2, b2, g2, bt2) = params
    # b1/b2 intentionally unused: under training-mode BatchNorm the per-channel
    # batch-mean subtraction cancels the conv bias exactly.
    N, Cin, H, W = x_nchw.shape
    Cout = w1.shape[0]
    Hp = ((H + 2 * PAD + 7) // 8) * 8        # 8-aligned per-image row stride

    # NCHW -> NHWC; pad rows (H) only: PAD leading zeros + trailing zeros up to
    # the aligned stride.  The W-direction zero padding is folded into the
    # banded weight matrices.
    x_nhwc = jnp.transpose(x_nchw, (0, 2, 3, 1))
    xp = jnp.pad(x_nhwc, ((0, 0), (PAD, Hp - H - PAD), (0, 0), (0, 0)))
    xp2 = xp.reshape(N * Hp, W * Cin)

    a1 = conv_weight_to_banded(w1, W).astype(jnp.bfloat16)     # (K, W*Cin,  W*Cout)
    a2 = conv_weight_to_banded(w2, W).astype(jnp.bfloat16)     # (K, W*Cout, W*Cout)

    def widen(v):  # per-channel (C,) -> wide-lane (1, W*C) with lane index w*C + c
        return jnp.tile(v.reshape(1, Cout), (1, W))

    gb = jnp.concatenate([widen(g1), widen(bt1), widen(g2), widen(bt2)], axis=0)

    fused = make_fused_conv_bn_relu_x2(N, H, W, Cin, Cout, Hp)
    out_wide = fused(xp2, a1, a2, gb)
    out_nhwc = out_wide.reshape(N, H, W, Cout)
    return jnp.transpose(out_nhwc, (0, 3, 1, 2))               # back to NCHW


def _reference_forward(x_nchw, params):
    """Pure-JAX/XLA reference of the torch module (train-mode BN), f32 HIGHEST."""
    (w1, b1, g1, bt1, w2, b2, g2, bt2) = params

    def block(x, w, b, g, bt):
        y = jax.lax.conv_general_dilated(
            x, w, window_strides=(1, 1), padding=((PAD, PAD), (PAD, PAD)),
            dimension_numbers=("NCHW", "OIHW", "NCHW"),
            precision=jax.lax.Precision.HIGHEST)
        y = y + b.reshape(1, -1, 1, 1)
        mean = jnp.mean(y, axis=(0, 2, 3), keepdims=True)
        var = jnp.mean((y - mean) ** 2, axis=(0, 2, 3), keepdims=True)
        yh = (y - mean) * jax.lax.rsqrt(var + EPS)
        return jnp.maximum(yh * g.reshape(1, -1, 1, 1) + bt.reshape(1, -1, 1, 1),
                           0.0)

    return block(block(x_nchw, w1, b1, g1, bt1), w2, b2, g2, bt2)


if __name__ == "__main__":
    key = jax.random.PRNGKey(0)
    ks = jax.random.split(key, 9)

    N, in_ch, out_ch, H, W = 2, 4, 8, 16, 16

    x = jax.random.normal(ks[0], (N, in_ch, H, W), dtype=jnp.float32)

    # deterministic synthetic parameters (shapes follow nn.Conv2d / nn.BatchNorm2d)
    w1 = 0.1 * jax.random.normal(ks[1], (out_ch, in_ch, K, K), jnp.float32)
    b1 = 0.1 * jax.random.normal(ks[2], (out_ch,), jnp.float32)
    w2 = 0.1 * jax.random.normal(ks[3], (out_ch, out_ch, K, K), jnp.float32)
    b2 = 0.1 * jax.random.normal(ks[4], (out_ch,), jnp.float32)
    g1 = 1.0 + 0.1 * jax.random.normal(ks[5], (out_ch,), jnp.float32)
    bt1 = 0.1 * jax.random.normal(ks[6], (out_ch,), jnp.float32)
    g2 = 1.0 + 0.1 * jax.random.normal(ks[7], (out_ch,), jnp.float32)
    bt2 = 0.1 * jax.random.normal(ks[8], (out_ch,), jnp.float32)

    params = (w1, b1, g1, bt1, w2, b2, g2, bt2)

    fwd = jax.jit(one_step_conv_forward)
    out = fwd(x, params)
    jax.block_until_ready(out)
    assert out.shape == (N, out_ch, H, W)

    # correctness check vs. a pure-XLA f32 HIGHEST-precision reference.  The
    # kernel feeds bf16 operands to the MXU (f32 accumulation), so worst-case
    # error is ~1e-2 scale on unit-variance BN outputs; structural bugs would
    # produce O(1) errors, so these bounds still catch them.
    ref = _reference_forward(x, params)
    err_max = float(jnp.max(jnp.abs(out - ref)))
    err_mean = float(jnp.mean(jnp.abs(out - ref)))
    assert err_max < 8e-2, f"mismatch vs reference: max abs err {err_max}"
    assert err_mean < 1.5e-2, f"mismatch vs reference: mean abs err {err_mean}"

    print("KERNEL_OK")
</pallas_src>

<mosaic_0001>
module attributes {stable_mosaic.version = 11 : i64} {
  func.func @kernel(%arg0: i32, %arg1: memref<48x64xf32, #tpu.memory_space<vmem>>, %arg2: memref<5x64x128xbf16, #tpu.memory_space<vmem>>, %arg3: memref<5x128x128xbf16, #tpu.memory_space<vmem>>, %arg4: memref<4x128xf32, #tpu.memory_space<vmem>>, %arg5: memref<32x128xf32, #tpu.memory_space<vmem>>, %arg6: memref<48x128xf32, #tpu.memory_space<vmem>>) attributes {dimension_semantics = [#tpu.dimension_semantics<arbitrary>], iteration_bounds = array<i64: 1>, scalar_prefetch = 0 : i64, scratch_operands = 1 : i64, tpu.core_type = #tpu.core_type<tc>, window_params = [{pipeline_mode = #tpu.pipeline_mode<synchronous>, transform_indices = @transform_0, window_bounds = array<i64: 48, 64>}, {pipeline_mode = #tpu.pipeline_mode<synchronous>, transform_indices = @transform_1, window_bounds = array<i64: 5, 64, 128>}, {pipeline_mode = #tpu.pipeline_mode<synchronous>, transform_indices = @transform_2, window_bounds = array<i64: 5, 128, 128>}, {pipeline_mode = #tpu.pipeline_mode<synchronous>, transform_indices = @transform_3, window_bounds = array<i64: 4, 128>}, {pipeline_mode = #tpu.pipeline_mode<synchronous>, transform_indices = @transform_4, window_bounds = array<i64: 32, 128>}]} {
    %c0 = arith.constant 0 : index
    %c0_0 = arith.constant 0 : index
    %0 = vector.load %arg4[%c0, %c0_0] : memref<4x128xf32, #tpu.memory_space<vmem>>, vector<4x128xf32>
    %1 = vector.extract_strided_slice %0 {offsets = [0, 0], sizes = [1, 128], strides = [1, 1]} : vector<4x128xf32> to vector<1x128xf32>
    %2 = vector.extract_strided_slice %0 {offsets = [1, 0], sizes = [1, 128], strides = [1, 1]} : vector<4x128xf32> to vector<1x128xf32>
    %3 = vector.extract_strided_slice %0 {offsets = [2, 0], sizes = [1, 128], strides = [1, 1]} : vector<4x128xf32> to vector<1x128xf32>
    %4 = vector.extract_strided_slice %0 {offsets = [3, 0], sizes = [1, 128], strides = [1, 1]} : vector<4x128xf32> to vector<1x128xf32>
    %5 = tpu.iota {dimensions = array<i32: 0>} : vector<128x128xi32>
    %c8_i32 = arith.constant 8 : i32
    %c0_i32 = arith.constant 0 : i32
    %6 = arith.cmpi eq, %c8_i32, %c0_i32 : i32
    %c1_i32 = arith.constant 1 : i32
    %7 = arith.select %6, %c1_i32, %c8_i32 : i32
    %8 = vector.broadcast %7 : i32 to vector<128x128xi32>
    %9 = arith.remsi %5, %8 : vector<128x128xi32>
    %c0_i32_1 = arith.constant 0 : i32
    %10 = vector.broadcast %c0_i32_1 : i32 to vector<128x128xi32>
    %11 = arith.cmpi ne, %9, %10 : vector<128x128xi32>
    %c0_i32_2 = arith.constant 0 : i32
    %12 = vector.broadcast %c0_i32_2 : i32 to vector<128x128xi32>
    %13 = arith.cmpi slt, %9, %12 : vector<128x128xi32>
    %c0_i32_3 = arith.constant 0 : i32
    %14 = arith.cmpi slt, %7, %c0_i32_3 : i32
    %15 = vector.broadcast %14 : i1 to vector<128x128xi1>
    %16 = vector.broadcast %15 : vector<128x128xi1> to vector<128x128xi1>
    %17 = arith.xori %13, %16 : vector<128x128xi1>
    %18 = arith.andi %17, %11 : vector<128x128xi1>
    %19 = vector.broadcast %7 : i32 to vector<128x128xi32>
    %20 = arith.addi %9, %19 : vector<128x128xi32>
    %21 = arith.select %18, %20, %9 : vector<128x128xi1>, vector<128x128xi32>
    %22 = tpu.iota {dimensions = array<i32: 1>} : vector<128x128xi32>
    %c8_i32_4 = arith.constant 8 : i32
    %c0_i32_5 = arith.constant 0 : i32
    %23 = arith.cmpi eq, %c8_i32_4, %c0_i32_5 : i32
    %c1_i32_6 = arith.constant 1 : i32
    %24 = arith.select %23, %c1_i32_6, %c8_i32_4 : i32
    %25 = vector.broadcast %24 : i32 to vector<128x128xi32>
    %26 = arith.remsi %22, %25 : vector<128x128xi32>
    %c0_i32_7 = arith.constant 0 : i32
    %27 = vector.broadcast %c0_i32_7 : i32 to vector<128x128xi32>
    %28 = arith.cmpi ne, %26, %27 : vector<128x128xi32>
    %c0_i32_8 = arith.constant 0 : i32
    %29 = vector.broadcast %c0_i32_8 : i32 to vector<128x128xi32>
    %30 = arith.cmpi slt, %26, %29 : vector<128x128xi32>
    %c0_i32_9 = arith.constant 0 : i32
    %31 = arith.cmpi slt, %24, %c0_i32_9 : i32
    %32 = vector.broadcast %31 : i1 to vector<128x128xi1>
    %33 = vector.broadcast %32 : vector<128x128xi1> to vector<128x128xi1>
    %34 = arith.xori %30, %33 : vector<128x128xi1>
    %35 = arith.andi %34, %28 : vector<128x128xi1>
    %36 = vector.broadcast %24 : i32 to vector<128x128xi32>
    %37 = arith.addi %26, %36 : vector<128x128xi32>
    %38 = arith.select %35, %37, %26 : vector<128x128xi1>, vector<128x128xi32>
    %39 = arith.cmpi eq, %21, %38 : vector<128x128xi32>
    %40 = arith.extui %39 : vector<128x128xi1> to vector<128x128xi32>
    %41 = arith.sitofp %40 : vector<128x128xi32> to vector<128x128xf32>
    %cst = arith.constant 0.000000e+00 : f32
    %42 = vector.broadcast %cst : f32 to vector<40x128xf32>
    %c0_10 = arith.constant 0 : index
    %c0_11 = arith.constant 0 : index
    %43 = vector.load %arg1[%c0_10, %c0_11] : memref<48x64xf32, #tpu.memory_space<vmem>>, vector<40x64xf32>
    %44 = arith.truncf %43 : vector<40x64xf32> to vector<40x64xbf16>
    %c0_12 = arith.constant 0 : index
    %c0_13 = arith.constant 0 : index
    %c0_14 = arith.constant 0 : index
    %45 = vector.load %arg2[%c0_12, %c0_13, %c0_14] : memref<5x64x128xbf16, #tpu.memory_space<vmem>>, vector<1x64x128xbf16>
    %46 = vector.shape_cast %45 : vector<1x64x128xbf16> to vector<64x128xbf16>
    %cst_15 = arith.constant dense<0.000000e+00> : vector<40x128xf32>
    %47 = tpu.matmul %44, %46, %cst_15 {dimension_numbers = #tpu.dot_dimension_numbers<[1], [0], [0], [1], [0, 0, 1, 1], [], []>} : vector<40x64xbf16>, vector<64x128xbf16>, vector<40x128xf32> -> vector<40x128xf32>
    %48 = arith.addf %42, %47 : vector<40x128xf32>
    %c1 = arith.constant 1 : index
    %c0_16 = arith.constant 0 : index
    %49 = vector.load %arg1[%c1, %c0_16] : memref<48x64xf32, #tpu.memory_space<vmem>>, vector<40x64xf32>
    %50 = arith.truncf %49 : vector<40x64xf32> to vector<40x64xbf16>
    %c1_17 = arith.constant 1 : index
    %c0_18 = arith.constant 0 : index
    %c0_19 = arith.constant 0 : index
    %51 = vector.load %arg2[%c1_17, %c0_18, %c0_19] : memref<5x64x128xbf16, #tpu.memory_space<vmem>>, vector<1x64x128xbf16>
    %52 = vector.shape_cast %51 : vector<1x64x128xbf16> to vector<64x128xbf16>
    %cst_20 = arith.constant dense<0.000000e+00> : vector<40x128xf32>
    %53 = tpu.matmul %50, %52, %cst_20 {dimension_numbers = #tpu.dot_dimension_numbers<[1], [0], [0], [1], [0, 0, 1, 1], [], []>} : vector<40x64xbf16>, vector<64x128xbf16>, vector<40x128xf32> -> vector<40x128xf32>
    %54 = arith.addf %48, %53 : vector<40x128xf32>
    %c2 = arith.constant 2 : index
    %c0_21 = arith.constant 0 : index
    %55 = vector.load %arg1[%c2, %c0_21] : memref<48x64xf32, #tpu.memory_space<vmem>>, vector<40x64xf32>
    %56 = arith.truncf %55 : vector<40x64xf32> to vector<40x64xbf16>
    %c2_22 = arith.constant 2 : index
    %c0_23 = arith.constant 0 : index
    %c0_24 = arith.constant 0 : index
    %57 = vector.load %arg2[%c2_22, %c0_23, %c0_24] : memref<5x64x128xbf16, #tpu.memory_space<vmem>>, vector<1x64x128xbf16>
    %58 = vector.shape_cast %57 : vector<1x64x128xbf16> to vector<64x128xbf16>
    %cst_25 = arith.constant dense<0.000000e+00> : vector<40x128xf32>
    %59 = tpu.matmul %56, %58, %cst_25 {dimension_numbers = #tpu.dot_dimension_numbers<[1], [0], [0], [1], [0, 0, 1, 1], [], []>} : vector<40x64xbf16>, vector<64x128xbf16>, vector<40x128xf32> -> vector<40x128xf32>
    %60 = arith.addf %54, %59 : vector<40x128xf32>
    %c3 = arith.constant 3 : index
    %c0_26 = arith.constant 0 : index
    %61 = vector.load %arg1[%c3, %c0_26] : memref<48x64xf32, #tpu.memory_space<vmem>>, vector<40x64xf32>
    %62 = arith.truncf %61 : vector<40x64xf32> to vector<40x64xbf16>
    %c3_27 = arith.constant 3 : index
    %c0_28 = arith.constant 0 : index
    %c0_29 = arith.constant 0 : index
    %63 = vector.load %arg2[%c3_27, %c0_28, %c0_29] : memref<5x64x128xbf16, #tpu.memory_space<vmem>>, vector<1x64x128xbf16>
    %64 = vector.shape_cast %63 : vector<1x64x128xbf16> to vector<64x128xbf16>
    %cst_30 = arith.constant dense<0.000000e+00> : vector<40x128xf32>
    %65 = tpu.matmul %62, %64, %cst_30 {dimension_numbers = #tpu.dot_dimension_numbers<[1], [0], [0], [1], [0, 0, 1, 1], [], []>} : vector<40x64xbf16>, vector<64x128xbf16>, vector<40x128xf32> -> vector<40x128xf32>
    %66 = arith.addf %60, %65 : vector<40x128xf32>
    %c4 = arith.constant 4 : index
    %c0_31 = arith.constant 0 : index
    %67 = vector.load %arg1[%c4, %c0_31] : memref<48x64xf32, #tpu.memory_space<vmem>>, vector<40x64xf32>
    %68 = arith.truncf %67 : vector<40x64xf32> to vector<40x64xbf16>
    %c4_32 = arith.constant 4 : index
    %c0_33 = arith.constant 0 : index
    %c0_34 = arith.constant 0 : index
    %69 = vector.load %arg2[%c4_32, %c0_33, %c0_34] : memref<5x64x128xbf16, #tpu.memory_space<vmem>>, vector<1x64x128xbf16>
    %70 = vector.shape_cast %69 : vector<1x64x128xbf16> to vector<64x128xbf16>
    %cst_35 = arith.constant dense<0.000000e+00> : vector<40x128xf32>
    %71 = tpu.matmul %68, %70, %cst_35 {dimension_numbers = #tpu.dot_dimension_numbers<[1], [0], [0], [1], [0, 0, 1, 1], [], []>} : vector<40x64xbf16>, vector<64x128xbf16>, vector<40x128xf32> -> vector<40x128xf32>
    %72 = arith.addf %66, %71 : vector<40x128xf32>
    %73 = vector.extract_strided_slice %72 {offsets = [0, 0], sizes = [16, 128], strides = [1, 1]} : vector<40x128xf32> to vector<16x128xf32>
    %74 = vector.extract_strided_slice %72 {offsets = [24, 0], sizes = [16, 128], strides = [1, 1]} : vector<40x128xf32> to vector<16x128xf32>
    %75 = tpu.concatenate %73, %74 in 0 : vector<16x128xf32>, vector<16x128xf32> -> vector<32x128xf32>
    %cst_36 = arith.constant dense<0.000000e+00> : vector<128xf32>
    %76 = vector.multi_reduction <add>, %75, %cst_36 [0] : vector<32x128xf32> to vector<128xf32>
    %77 = vector.shape_cast %76 : vector<128xf32> to vector<1x128xf32>
    %cst_37 = arith.constant dense<0.000000e+00> : vector<1x128xf32>
    %78 = tpu.matmul %77, %41, %cst_37 {dimension_numbers = #tpu.dot_dimension_numbers<[1], [0], [0], [1], [0, 0, 1, 1], [], []>} : vector<1x128xf32>, vector<128x128xf32>, vector<1x128xf32> -> vector<1x128xf32>
    %cst_38 = arith.constant 0.001953125 : f32
    %79 = vector.broadcast %cst_38 : f32 to vector<1x128xf32>
    %80 = arith.mulf %78, %79 : vector<1x128xf32>
    %81 = vector.broadcast %80 : vector<1x128xf32> to vector<32x128xf32>
    %82 = arith.subf %75, %81 : vector<32x128xf32>
    %83 = arith.mulf %82, %82 : vector<32x128xf32>
    %cst_39 = arith.constant dense<0.000000e+00> : vector<128xf32>
    %84 = vector.multi_reduction <add>, %83, %cst_39 [0] : vector<32x128xf32> to vector<128xf32>
    %85 = vector.shape_cast %84 : vector<128xf32> to vector<1x128xf32>
    %cst_40 = arith.constant dense<0.000000e+00> : vector<1x128xf32>
    %86 = tpu.matmul %85, %41, %cst_40 {dimension_numbers = #tpu.dot_dimension_numbers<[1], [0], [0], [1], [0, 0, 1, 1], [], []>} : vector<1x128xf32>, vector<128x128xf32>, vector<1x128xf32> -> vector<1x128xf32>
    %cst_41 = arith.constant 0.001953125 : f32
    %87 = vector.broadcast %cst_41 : f32 to vector<1x128xf32>
    %88 = arith.mulf %86, %87 : vector<1x128xf32>
    %cst_42 = arith.constant 9.99999974E-6 : f32
    %89 = vector.broadcast %cst_42 : f32 to vector<1x128xf32>
    %90 = arith.addf %88, %89 : vector<1x128xf32>
    %91 = math.rsqrt %90 : vector<1x128xf32>
    %92 = arith.mulf %1, %91 : vector<1x128xf32>
    %93 = vector.broadcast %92 : vector<1x128xf32> to vector<32x128xf32>
    %94 = arith.mulf %82, %93 : vector<32x128xf32>
    %95 = vector.broadcast %2 : vector<1x128xf32> to vector<32x128xf32>
    %96 = arith.addf %94, %95 : vector<32x128xf32>
    %cst_43 = arith.constant 0.000000e+00 : f32
    %97 = vector.broadcast %cst_43 : f32 to vector<32x128xf32>
    %98 = arith.maximumf %96, %97 : vector<32x128xf32>
    %cst_44 = arith.constant 0.000000e+00 : f32
    %99 = vector.broadcast %cst_44 : f32 to vector<2x128xf32>
    %cst_45 = arith.constant 0.000000e+00 : f32
    %100 = vector.broadcast %cst_45 : f32 to vector<6x128xf32>
    %c0_46 = arith.constant 0 : index
    %c0_47 = arith.constant 0 : index
    %101 = vector.load %arg6[%c0_46, %c0_47] : memref<48x128xf32, #tpu.memory_space<vmem>>, vector<2x128xf32>
    tpu.vector_store %arg6[%c0_46, %c0_47], %99 {strides = array<i32>} : memref<48x128xf32, #tpu.memory_space<vmem>>, vector<2x128xf32>,
    %102 = vector.extract_strided_slice %98 {offsets = [0, 0], sizes = [16, 128], strides = [1, 1]} : vector<32x128xf32> to vector<16x128xf32>
    %c2_48 = arith.constant 2 : index
    %c0_49 = arith.constant 0 : index
    %103 = vector.load %arg6[%c2_48, %c0_49] : memref<48x128xf32, #tpu.memory_space<vmem>>, vector<16x128xf32>
    tpu.vector_store %arg6[%c2_48, %c0_49], %102 {strides = array<i32>} : memref<48x128xf32, #tpu.memory_space<vmem>>, vector<16x128xf32>,
    %c18 = arith.constant 18 : index
    %c0_50 = arith.constant 0 : index
    %104 = vector.load %arg6[%c18, %c0_50] : memref<48x128xf32, #tpu.memory_space<vmem>>, vector<6x128xf32>
    tpu.vector_store %arg6[%c18, %c0_50], %100 {strides = array<i32>} : memref<48x128xf32, #tpu.memory_space<vmem>>, vector<6x128xf32>,
    %c24 = arith.constant 24 : index
    %c0_51 = arith.constant 0 : index
    %105 = vector.load %arg6[%c24, %c0_51] : memref<48x128xf32, #tpu.memory_space<vmem>>, vector<2x128xf32>
    tpu.vector_store %arg6[%c24, %c0_51], %99 {strides = array<i32>} : memref<48x128xf32, #tpu.memory_space<vmem>>, vector<2x128xf32>,
    %106 = vector.extract_strided_slice %98 {offsets = [16, 0], sizes = [16, 128], strides = [1, 1]} : vector<32x128xf32> to vector<16x128xf32>
    %c26 = arith.constant 26 : index
    %c0_52 = arith.constant 0 : index
    %107 = vector.load %arg6[%c26, %c0_52] : memref<48x128xf32, #tpu.memory_space<vmem>>, vector<16x128xf32>
    tpu.vector_store %arg6[%c26, %c0_52], %106 {strides = array<i32>} : memref<48x128xf32, #tpu.memory_space<vmem>>, vector<16x128xf32>,
    %c42 = arith.constant 42 : index
    %c0_53 = arith.constant 0 : index
    %108 = vector.load %arg6[%c42, %c0_53] : memref<48x128xf32, #tpu.memory_space<vmem>>, vector<6x128xf32>
    tpu.vector_store %arg6[%c42, %c0_53], %100 {strides = array<i32>} : memref<48x128xf32, #tpu.memory_space<vmem>>, vector<6x128xf32>,
    %cst_54 = arith.constant 0.000000e+00 : f32
    %109 = vector.broadcast %cst_54 : f32 to vector<40x128xf32>
    %c0_55 = arith.constant 0 : index
    %c0_56 = arith.constant 0 : index
    %110 = vector.load %arg6[%c0_55, %c0_56] : memref<48x128xf32, #tpu.memory_space<vmem>>, vector<40x128xf32>
    %111 = arith.truncf %110 : vector<40x128xf32> to vector<40x128xbf16>
    %c0_57 = arith.constant 0 : index
    %c0_58 = arith.constant 0 : index
    %c0_59 = arith.constant 0 : index
    %112 = vector.load %arg3[%c0_57, %c0_58, %c0_59] : memref<5x128x128xbf16, #tpu.memory_space<vmem>>, vector<1x128x128xbf16>
    %113 = vector.shape_cast %112 : vector<1x128x128xbf16> to vector<128x128xbf16>
    %cst_60 = arith.constant dense<0.000000e+00> : vector<40x128xf32>
    %114 = tpu.matmul %111, %113, %cst_60 {dimension_numbers = #tpu.dot_dimension_numbers<[1], [0], [0], [1], [0, 0, 1, 1], [], []>} : vector<40x128xbf16>, vector<128x128xbf16>, vector<40x128xf32> -> vector<40x128xf32>
    %115 = arith.addf %109, %114 : vector<40x128xf32>
    %c1_61 = arith.constant 1 : index
    %c0_62 = arith.constant 0 : index
    %116 = vector.load %arg6[%c1_61, %c0_62] : memref<48x128xf32, #tpu.memory_space<vmem>>, vector<40x128xf32>
    %117 = arith.truncf %116 : vector<40x128xf32> to vector<40x128xbf16>
    %c1_63 = arith.constant 1 : index
    %c0_64 = arith.constant 0 : index
    %c0_65 = arith.constant 0 : index
    %118 = vector.load %arg3[%c1_63, %c0_64, %c0_65] : memref<5x128x128xbf16, #tpu.memory_space<vmem>>, vector<1x128x128xbf16>
    %119 = vector.shape_cast %118 : vector<1x128x128xbf16> to vector<128x128xbf16>
    %cst_66 = arith.constant dense<0.000000e+00> : vector<40x128xf32>
    %120 = tpu.matmul %117, %119, %cst_66 {dimension_numbers = #tpu.dot_dimension_numbers<[1], [0], [0], [1], [0, 0, 1, 1], [], []>} : vector<40x128xbf16>, vector<128x128xbf16>, vector<40x128xf32> -> vector<40x128xf32>
    %121 = arith.addf %115, %120 : vector<40x128xf32>
    %c2_67 = arith.constant 2 : index
    %c0_68 = arith.constant 0 : index
    %122 = vector.load %arg6[%c2_67, %c0_68] : memref<48x128xf32, #tpu.memory_space<vmem>>, vector<40x128xf32>
    %123 = arith.truncf %122 : vector<40x128xf32> to vector<40x128xbf16>
    %c2_69 = arith.constant 2 : index
    %c0_70 = arith.constant 0 : index
    %c0_71 = arith.constant 0 : index
    %124 = vector.load %arg3[%c2_69, %c0_70, %c0_71] : memref<5x128x128xbf16, #tpu.memory_space<vmem>>, vector<1x128x128xbf16>
    %125 = vector.shape_cast %124 : vector<1x128x128xbf16> to vector<128x128xbf16>
    %cst_72 = arith.constant dense<0.000000e+00> : vector<40x128xf32>
    %126 = tpu.matmul %123, %125, %cst_72 {dimension_numbers = #tpu.dot_dimension_numbers<[1], [0], [0], [1], [0, 0, 1, 1], [], []>} : vector<40x128xbf16>, vector<128x128xbf16>, vector<40x128xf32> -> vector<40x128xf32>
    %127 = arith.addf %121, %126 : vector<40x128xf32>
    %c3_73 = arith.constant 3 : index
    %c0_74 = arith.constant 0 : index
    %128 = vector.load %arg6[%c3_73, %c0_74] : memref<48x128xf32, #tpu.memory_space<vmem>>, vector<40x128xf32>
    %129 = arith.truncf %128 : vector<40x128xf32> to vector<40x128xbf16>
    %c3_75 = arith.constant 3 : index
    %c0_76 = arith.constant 0 : index
    %c0_77 = arith.constant 0 : index
    %130 = vector.load %arg3[%c3_75, %c0_76, %c0_77] : memref<5x128x128xbf16, #tpu.memory_space<vmem>>, vector<1x128x128xbf16>
    %131 = vector.shape_cast %130 : vector<1x128x128xbf16> to vector<128x128xbf16>
    %cst_78 = arith.constant dense<0.000000e+00> : vector<40x128xf32>
    %132 = tpu.matmul %129, %131, %cst_78 {dimension_numbers = #tpu.dot_dimension_numbers<[1], [0], [0], [1], [0, 0, 1, 1], [], []>} : vector<40x128xbf16>, vector<128x128xbf16>, vector<40x128xf32> -> vector<40x128xf32>
    %133 = arith.addf %127, %132 : vector<40x128xf32>
    %c4_79 = arith.constant 4 : index
    %c0_80 = arith.constant 0 : index
    %134 = vector.load %arg6[%c4_79, %c0_80] : memref<48x128xf32, #tpu.memory_space<vmem>>, vector<40x128xf32>
    %135 = arith.truncf %134 : vector<40x128xf32> to vector<40x128xbf16>
    %c4_81 = arith.constant 4 : index
    %c0_82 = arith.constant 0 : index
    %c0_83 = arith.constant 0 : index
    %136 = vector.load %arg3[%c4_81, %c0_82, %c0_83] : memref<5x128x128xbf16, #tpu.memory_space<vmem>>, vector<1x128x128xbf16>
    %137 = vector.shape_cast %136 : vector<1x128x128xbf16> to vector<128x128xbf16>
    %cst_84 = arith.constant dense<0.000000e+00> : vector<40x128xf32>
    %138 = tpu.matmul %135, %137, %cst_84 {dimension_numbers = #tpu.dot_dimension_numbers<[1], [0], [0], [1], [0, 0, 1, 1], [], []>} : vector<40x128xbf16>, vector<128x128xbf16>, vector<40x128xf32> -> vector<40x128xf32>
    %139 = arith.addf %133, %138 : vector<40x128xf32>
    %140 = vector.extract_strided_slice %139 {offsets = [0, 0], sizes = [16, 128], strides = [1, 1]} : vector<40x128xf32> to vector<16x128xf32>
    %141 = vector.extract_strided_slice %139 {offsets = [24, 0], sizes = [16, 128], strides = [1, 1]} : vector<40x128xf32> to vector<16x128xf32>
    %142 = tpu.concatenate %140, %141 in 0 : vector<16x128xf32>, vector<16x128xf32> -> vector<32x128xf32>
    %cst_85 = arith.constant dense<0.000000e+00> : vector<128xf32>
    %143 = vector.multi_reduction <add>, %142, %cst_85 [0] : vector<32x128xf32> to vector<128xf32>
    %144 = vector.shape_cast %143 : vector<128xf32> to vector<1x128xf32>
    %cst_86 = arith.constant dense<0.000000e+00> : vector<1x128xf32>
    %145 = tpu.matmul %144, %41, %cst_86 {dimension_numbers = #tpu.dot_dimension_numbers<[1], [0], [0], [1], [0, 0, 1, 1], [], []>} : vector<1x128xf32>, vector<128x128xf32>, vector<1x128xf32> -> vector<1x128xf32>
    %cst_87 = arith.constant 0.001953125 : f32
    %146 = vector.broadcast %cst_87 : f32 to vector<1x128xf32>
    %147 = arith.mulf %145, %146 : vector<1x128xf32>
    %148 = vector.broadcast %147 : vector<1x128xf32> to vector<32x128xf32>
    %149 = arith.subf %142, %148 : vector<32x128xf32>
    %150 = arith.mulf %149, %149 : vector<32x128xf32>
    %cst_88 = arith.constant dense<0.000000e+00> : vector<128xf32>
    %151 = vector.multi_reduction <add>, %150, %cst_88 [0] : vector<32x128xf32> to vector<128xf32>
    %152 = vector.shape_cast %151 : vector<128xf32> to vector<1x128xf32>
    %cst_89 = arith.constant dense<0.000000e+00> : vector<1x128xf32>
    %153 = tpu.matmul %152, %41, %cst_89 {dimension_numbers = #tpu.dot_dimension_numbers<[1], [0], [0], [1], [0, 0, 1, 1], [], []>} : vector<1x128xf32>, vector<128x128xf32>, vector<1x128xf32> -> vector<1x128xf32>
    %cst_90 = arith.constant 0.001953125 : f32
    %154 = vector.broadcast %cst_90 : f32 to vector<1x128xf32>
    %155 = arith.mulf %153, %154 : vector<1x128xf32>
    %cst_91 = arith.constant 9.99999974E-6 : f32
    %156 = vector.broadcast %cst_91 : f32 to vector<1x128xf32>
    %157 = arith.addf %155, %156 : vector<1x128xf32>
    %158 = math.rsqrt %157 : vector<1x128xf32>
    %159 = arith.mulf %3, %158 : vector<1x128xf32>
    %160 = vector.broadcast %159 : vector<1x128xf32> to vector<32x128xf32>
    %161 = arith.mulf %149, %160 : vector<32x128xf32>
    %162 = vector.broadcast %4 : vector<1x128xf32> to vector<32x128xf32>
    %163 = arith.addf %161, %162 : vector<32x128xf32>
    %cst_92 = arith.constant 0.000000e+00 : f32
    %164 = vector.broadcast %cst_92 : f32 to vector<32x128xf32>
    %165 = arith.maximumf %163, %164 : vector<32x128xf32>
    %c0_93 = arith.constant 0 : index
    %c0_94 = arith.constant 0 : index
    %166 = vector.load %arg5[%c0_93, %c0_94] : memref<32x128xf32, #tpu.memory_space<vmem>>, vector<32x128xf32>
    tpu.vector_store %arg5[%c0_93, %c0_94], %165 {strides = array<i32>} : memref<32x128xf32, #tpu.memory_space<vmem>>, vector<32x128xf32>,
    return
  }
  func.func @transform_0(%arg0: i32) -> (i32, i32) {
    %c0_i32 = arith.constant 0 : i32
    %c0_i32_0 = arith.constant 0 : i32
    %c0_i32_1 = arith.constant 0 : i32
    return %c0_i32, %c0_i32_0 : i32, i32
  }
  func.func @transform_1(%arg0: i32) -> (i32, i32, i32) {
    %c0_i32 = arith.constant 0 : i32
    %c0_i32_0 = arith.constant 0 : i32
    %c0_i32_1 = arith.constant 0 : i32
    %c0_i32_2 = arith.constant 0 : i32
    return %c0_i32, %c0_i32_0, %c0_i32_1 : i32, i32, i32
  }
  func.func @transform_2(%arg0: i32) -> (i32, i32, i32) {
    %c0_i32 = arith.constant 0 : i32
    %c0_i32_0 = arith.constant 0 : i32
    %c0_i32_1 = arith.constant 0 : i32
    %c0_i32_2 = arith.constant 0 : i32
    return %c0_i32, %c0_i32_0, %c0_i32_1 : i32, i32, i32
  }
  func.func @transform_3(%arg0: i32) -> (i32, i32) {
    %c0_i32 = arith.constant 0 : i32
    %c0_i32_0 = arith.constant 0 : i32
    %c0_i32_1 = arith.constant 0 : i32
    return %c0_i32, %c0_i32_0 : i32, i32
  }
  func.func @transform_4(%arg0: i32) -> (i32, i32) {
    %c0_i32 = arith.constant 0 : i32
    %c0_i32_0 = arith.constant 0 : i32
    %c0_i32_1 = arith.constant 0 : i32
    return %c0_i32, %c0_i32_0 : i32, i32
  }
}

</mosaic_0001>

<llo_original>
// kernel: one_step_conv_forward.1
$region0: #{one_step_conv_forward.1}
  #allocation0 [shape = 'u32[]', space=smem, size = 0x4, offset = 0x4, fixed_abs, tag = 'smem constant byte address 0x4 - core index']
  #allocation1 [shape = 'u32[144,128]{1,0:T(1,128)}', space=vmem, size = 0x12000, scoped, tag = 'internal scratch']
  #allocation2 [shape = 'f32[48,128]{1,0:T(8,128)}', space=vmem, size = 0x6000, scoped, tag = 'scratch operand']
  %s0 = inlined_call_operand.vmem [shape: f32[48,64], index: 0, kind: input, shape index: {}]
  %s1 = inlined_call_operand.vmem [shape: bf16[5,64,128], index: 1, kind: input, shape index: {}]
  %s2 = inlined_call_operand.vmem [shape: bf16[5,128,128], index: 2, kind: input, shape index: {}]
  %s3 = inlined_call_operand.vmem [shape: f32[4,128], index: 3, kind: input, shape index: {}]
  %s4 = inlined_call_operand.vmem [shape: f32[32,128], index: 4, kind: output, shape index: {}]
  %s5 = sld [smem:[#allocation0]]
  $region26: #{one_step_conv_forward.1} parent=0
    _
  %s7 = ssub.s32 1, %s5
  %s8 = scalar_select 0, %s7, %s5
  // Predicated region
  $region2: #{one_step_conv_forward.1} parent=0 // pred_check
    _
  $region3: #{one_step_conv_forward.1} parent=0 // pred_check_branch
    %10 = sbr.rel (0) target = $region5
  $region4: #{one_step_conv_forward.1} parent=0 // pred_region
    _
  $region5: #{one_step_conv_forward.1} parent=0 // pred_fallthru
    _
  // Predicated region
  $region6: #{one_step_conv_forward.1} parent=0 // pred_check
    _
  $region7: #{one_step_conv_forward.1} parent=0 // pred_check_branch
    %12 = sbr.rel (0) target = $region9
  $region8: #{one_step_conv_forward.1} parent=0 // pred_region
    _
  $region9: #{one_step_conv_forward.1} parent=0 // pred_fallthru
    _
  // Predicated region
  $region10: #{one_step_conv_forward.1} parent=0 // pred_check
    _
  $region11: #{one_step_conv_forward.1} parent=0 // pred_check_branch
    %14 = sbr.rel (0) target = $region13
  $region12: #{one_step_conv_forward.1} parent=0 // pred_region
    _
  $region13: #{one_step_conv_forward.1} parent=0 // pred_fallthru
    _
  // Predicated region
  $region14: #{one_step_conv_forward.1} parent=0 // pred_check
    _
  $region15: #{one_step_conv_forward.1} parent=0 // pred_check_branch
    %16 = sbr.rel (0) target = $region17
  $region16: #{one_step_conv_forward.1} parent=0 // pred_region
    _
  $region17: #{one_step_conv_forward.1} parent=0 // pred_fallthru
    _
  %v18 = vld [vmem:[%s3] sm:$0xf]
  %v19 = vlaneseq
  %v20 = vshrl.u32 %v19, 7
  %v21 = vadd.s32 %v20, 8
  %v22 = vadd.s32 %v20, 16
  %v23 = vadd.s32 %v20, 24
  %v24 = vadd.s32 %v20, 32
  %v25 = vadd.s32 %v20, 40
  %v26 = vadd.s32 %v20, 48
  %v27 = vadd.s32 %v20, 56
  %v28 = vadd.s32 %v20, 64
  %v29 = vadd.s32 %v20, 72
  %v30 = vadd.s32 %v20, 80
  %v31 = vadd.s32 %v20, 88
  %v32 = vadd.s32 %v20, 96
  %v33 = vadd.s32 %v20, 104
  %v34 = vadd.s32 %v20, 112
  %v35 = vadd.s32 %v20, 120
  %vm36 = vcmp.lt.s32.totalorder %v20, 0
  %v37 = vsub.s32 0, %v20
  %v38 = vsel %vm36, %v37, %v20
  %v39 = vshrl.u32 %v38, 3
  %v40 = vand.u32 %v38, 7
  %v41 = vsub.s32 0, %v40
  %v42 = vsel %vm36, %v41, %v40
  %vm43 = vcmp.lt.s32.totalorder %v21, 0
  %v44 = vsub.s32 0, %v21
  %v45 = vsel %vm43, %v44, %v21
  %v46 = vshrl.u32 %v45, 3
  %v47 = vand.u32 %v45, 7
  %v48 = vsub.s32 0, %v47
  %v49 = vsel %vm43, %v48, %v47
  %vm50 = vcmp.lt.s32.totalorder %v22, 0
  %v51 = vsub.s32 0, %v22
  %v52 = vsel %vm50, %v51, %v22
  %v53 = vshrl.u32 %v52, 3
  %v54 = vand.u32 %v52, 7
  %v55 = vsub.s32 0, %v54
  %v56 = vsel %vm50, %v55, %v54
  %vm57 = vcmp.lt.s32.totalorder %v23, 0
  %v58 = vsub.s32 0, %v23
  %v59 = vsel %vm57, %v58, %v23
  %v60 = vshrl.u32 %v59, 3
  %v61 = vand.u32 %v59, 7
  %v62 = vsub.s32 0, %v61
  %v63 = vsel %vm57, %v62, %v61
  %vm64 = vcmp.lt.s32.totalorder %v24, 0
  %v65 = vsub.s32 0, %v24
  %v66 = vsel %vm64, %v65, %v24
  %v67 = vshrl.u32 %v66, 3
  %v68 = vand.u32 %v66, 7
  %v69 = vsub.s32 0, %v68
  %v70 = vsel %vm64, %v69, %v68
  %vm71 = vcmp.lt.s32.totalorder %v25, 0
  %v72 = vsub.s32 0, %v25
  %v73 = vsel %vm71, %v72, %v25
  %v74 = vshrl.u32 %v73, 3
  %v75 = vand.u32 %v73, 7
  %v76 = vsub.s32 0, %v75
  %v77 = vsel %vm71, %v76, %v75
  %vm78 = vcmp.lt.s32.totalorder %v26, 0
  %v79 = vsub.s32 0, %v26
  %v80 = vsel %vm78, %v79, %v26
  %v81 = vshrl.u32 %v80, 3
  %v82 = vand.u32 %v80, 7
  %v83 = vsub.s32 0, %v82
  %v84 = vsel %vm78, %v83, %v82
  %vm85 = vcmp.lt.s32.totalorder %v27, 0
  %v86 = vsub.s32 0, %v27
  %v87 = vsel %vm85, %v86, %v27
  %v88 = vshrl.u32 %v87, 3
  %v89 = vand.u32 %v87, 7
  %v90 = vsub.s32 0, %v89
  %v91 = vsel %vm85, %v90, %v89
  %vm92 = vcmp.lt.s32.totalorder %v28, 0
  %v93 = vsub.s32 0, %v28
  %v94 = vsel %vm92, %v93, %v28
  %v95 = vshrl.u32 %v94, 3
  %v96 = vand.u32 %v94, 7
  %v97 = vsub.s32 0, %v96
  %v98 = vsel %vm92, %v97, %v96
  %vm99 = vcmp.lt.s32.totalorder %v29, 0
  %v100 = vsub.s32 0, %v29
  %v101 = vsel %vm99, %v100, %v29
  %v102 = vshrl.u32 %v101, 3
  %v103 = vand.u32 %v101, 7
  %v104 = vsub.s32 0, %v103
  %v105 = vsel %vm99, %v104, %v103
  %vm106 = vcmp.lt.s32.totalorder %v30, 0
  %v107 = vsub.s32 0, %v30
  %v108 = vsel %vm106, %v107, %v30
  %v109 = vshrl.u32 %v108, 3
  %v110 = vand.u32 %v108, 7
  %v111 = vsub.s32 0, %v110
  %v112 = vsel %vm106, %v111, %v110
  %vm113 = vcmp.lt.s32.totalorder %v31, 0
  %v114 = vsub.s32 0, %v31
  %v115 = vsel %vm113, %v114, %v31
  %v116 = vshrl.u32 %v115, 3
  %v117 = vand.u32 %v115, 7
  %v118 = vsub.s32 0, %v117
  %v119 = vsel %vm113, %v118, %v117
  %vm120 = vcmp.lt.s32.totalorder %v32, 0
  %v121 = vsub.s32 0, %v32
  %v122 = vsel %vm120, %v121, %v32
  %v123 = vshrl.u32 %v122, 3
  %v124 = vand.u32 %v122, 7
  %v125 = vsub.s32 0, %v124
  %v126 = vsel %vm120, %v125, %v124
  %vm127 = vcmp.lt.s32.totalorder %v33, 0
  %v128 = vsub.s32 0, %v33
  %v129 = vsel %vm127, %v128, %v33
  %v130 = vshrl.u32 %v129, 3
  %v131 = vand.u32 %v129, 7
  %v132 = vsub.s32 0, %v131
  %v133 = vsel %vm127, %v132, %v131
  %vm134 = vcmp.lt.s32.totalorder %v34, 0
  %v135 = vsub.s32 0, %v34
  %v136 = vsel %vm134, %v135, %v34
  %v137 = vshrl.u32 %v136, 3
  %v138 = vand.u32 %v136, 7
  %v139 = vsub.s32 0, %v138
  %v140 = vsel %vm134, %v139, %v138
  %vm141 = vcmp.lt.s32.totalorder %v35, 0
  %v142 = vsub.s32 0, %v35
  %v143 = vsel %vm141, %v142, %v35
  %v144 = vshrl.u32 %v143, 3
  %v145 = vand.u32 %v143, 7
  %v146 = vsub.s32 0, %v145
  %v147 = vsel %vm141, %v146, %v145
  %vm148 = vcmp.ne.s32.totalorder %v42, 0
  %vm149 = vcmp.ne.s32.totalorder %v49, 0
  %vm150 = vcmp.ne.s32.totalorder %v56, 0
  %vm151 = vcmp.ne.s32.totalorder %v63, 0
  %vm152 = vcmp.ne.s32.totalorder %v70, 0
  %vm153 = vcmp.ne.s32.totalorder %v77, 0
  %vm154 = vcmp.ne.s32.totalorder %v84, 0
  %vm155 = vcmp.ne.s32.totalorder %v91, 0
  %vm156 = vcmp.ne.s32.totalorder %v98, 0
  %vm157 = vcmp.ne.s32.totalorder %v105, 0
  %vm158 = vcmp.ne.s32.totalorder %v112, 0
  %vm159 = vcmp.ne.s32.totalorder %v119, 0
  %vm160 = vcmp.ne.s32.totalorder %v126, 0
  %vm161 = vcmp.ne.s32.totalorder %v133, 0
  %vm162 = vcmp.ne.s32.totalorder %v140, 0
  %vm163 = vcmp.ne.s32.totalorder %v147, 0
  %vm164 = vcmp.lt.s32.totalorder %v42, 0
  %vm165 = vcmp.lt.s32.totalorder %v49, 0
  %vm166 = vcmp.lt.s32.totalorder %v56, 0
  %vm167 = vcmp.lt.s32.totalorder %v63, 0
  %vm168 = vcmp.lt.s32.totalorder %v70, 0
  %vm169 = vcmp.lt.s32.totalorder %v77, 0
  %vm170 = vcmp.lt.s32.totalorder %v84, 0
  %vm171 = vcmp.lt.s32.totalorder %v91, 0
  %vm172 = vcmp.lt.s32.totalorder %v98, 0
  %vm173 = vcmp.lt.s32.totalorder %v105, 0
  %vm174 = vcmp.lt.s32.totalorder %v112, 0
  %vm175 = vcmp.lt.s32.totalorder %v119, 0
  %vm176 = vcmp.lt.s32.totalorder %v126, 0
  %vm177 = vcmp.lt.s32.totalorder %v133, 0
  %vm178 = vcmp.lt.s32.totalorder %v140, 0
  %vm179 = vcmp.lt.s32.totalorder %v147, 0
  %vm180 = vmand %vm164, %vm148
  %vm181 = vmand %vm165, %vm149
  %vm182 = vmand %vm166, %vm150
  %vm183 = vmand %vm167, %vm151
  %vm184 = vmand %vm168, %vm152
  %vm185 = vmand %vm169, %vm153
  %vm186 = vmand %vm170, %vm154
  %vm187 = vmand %vm171, %vm155
  %vm188 = vmand %vm172, %vm156
  %vm189 = vmand %vm173, %vm157
  %vm190 = vmand %vm174, %vm158
  %vm191 = vmand %vm175, %vm159
  %vm192 = vmand %vm176, %vm160
  %vm193 = vmand %vm177, %vm161
  %vm194 = vmand %vm178, %vm162
  %vm195 = vmand %vm179, %vm163
  %v196 = vadd.s32 %v42, 8
  %v197 = vadd.s32 %v49, 8
  %v198 = vadd.s32 %v56, 8
  %v199 = vadd.s32 %v63, 8
  %v200 = vadd.s32 %v70, 8
  %v201 = vadd.s32 %v77, 8
  %v202 = vadd.s32 %v84, 8
  %v203 = vadd.s32 %v91, 8
  %v204 = vadd.s32 %v98, 8
  %v205 = vadd.s32 %v105, 8
  %v206 = vadd.s32 %v112, 8
  %v207 = vadd.s32 %v119, 8
  %v208 = vadd.s32 %v126, 8
  %v209 = vadd.s32 %v133, 8
  %v210 = vadd.s32 %v140, 8
  %v211 = vadd.s32 %v147, 8
  %v212 = vsel %vm180, %v196, %v42
  %v213 = vsel %vm181, %v197, %v49
  %v214 = vsel %vm182, %v198, %v56
  %v215 = vsel %vm183, %v199, %v63
  %v216 = vsel %vm184, %v200, %v70
  %v217 = vsel %vm185, %v201, %v77
  %v218 = vsel %vm186, %v202, %v84
  %v219 = vsel %vm187, %v203, %v91
  %v220 = vsel %vm188, %v204, %v98
  %v221 = vsel %vm189, %v205, %v105
  %v222 = vsel %vm190, %v206, %v112
  %v223 = vsel %vm191, %v207, %v119
  %v224 = vsel %vm192, %v208, %v126
  %v225 = vsel %vm193, %v209, %v133
  %v226 = vsel %vm194, %v210, %v140
  %v227 = vsel %vm195, %v211, %v147
  %v228 = vlaneseq
  %v229 = vand.u32 %v228, 127
  %vm230 = vcmp.lt.s32.totalorder %v229, 0
  %v231 = vsub.s32 0, %v229
  %v232 = vsel %vm230, %v231, %v229
  %v233 = vshrl.u32 %v232, 3
  %v234 = vand.u32 %v232, 7
  %v235 = vsub.s32 0, %v234
  %v236 = vsel %vm230, %v235, %v234
  %vm237 = vcmp.ne.s32.totalorder %v236, 0
  %vm238 = vcmp.lt.s32.totalorder %v236, 0
  %vm239 = vmand %vm238, %vm237
  %v240 = vadd.s32 %v236, 8
  %v241 = vsel %vm239, %v240, %v236
  %vm242 = vcmp.eq.s32.totalorder %v212, %v241
  %vm243 = vcmp.eq.s32.totalorder %v213, %v241
  %vm244 = vcmp.eq.s32.totalorder %v214, %v241
  %vm245 = vcmp.eq.s32.totalorder %v215, %v241
  %vm246 = vcmp.eq.s32.totalorder %v216, %v241
  %vm247 = vcmp.eq.s32.totalorder %v217, %v241
  %vm248 = vcmp.eq.s32.totalorder %v218, %v241
  %vm249 = vcmp.eq.s32.totalorder %v219, %v241
  %vm250 = vcmp.eq.s32.totalorder %v220, %v241
  %vm251 = vcmp.eq.s32.totalorder %v221, %v241
  %vm252 = vcmp.eq.s32.totalorder %v222, %v241
  %vm253 = vcmp.eq.s32.totalorder %v223, %v241
  %vm254 = vcmp.eq.s32.totalorder %v224, %v241
  %vm255 = vcmp.eq.s32.totalorder %v225, %v241
  %vm256 = vcmp.eq.s32.totalorder %v226, %v241
  %vm257 = vcmp.eq.s32.totalorder %v227, %v241
  %v258 = vsel %vm242, 1, 0
  %v259 = vsel %vm243, 1, 0
  %v260 = vsel %vm244, 1, 0
  %v261 = vsel %vm245, 1, 0
  %v262 = vsel %vm246, 1, 0
  %v263 = vsel %vm247, 1, 0
  %v264 = vsel %vm248, 1, 0
  %v265 = vsel %vm249, 1, 0
  %v266 = vsel %vm250, 1, 0
  %v267 = vsel %vm251, 1, 0
  %v268 = vsel %vm252, 1, 0
  %v269 = vsel %vm253, 1, 0
  %v270 = vsel %vm254, 1, 0
  %v271 = vsel %vm255, 1, 0
  %v272 = vsel %vm256, 1, 0
  %v273 = vsel %vm257, 1, 0
  %v274 = vcvt.s32.f32 %v258
  %v275 = vcvt.s32.f32 %v259
  %v276 = vcvt.s32.f32 %v260
  %v277 = vcvt.s32.f32 %v261
  %v278 = vcvt.s32.f32 %v262
  %v279 = vcvt.s32.f32 %v263
  %v280 = vcvt.s32.f32 %v264
  %v281 = vcvt.s32.f32 %v265
  %v282 = vcvt.s32.f32 %v266
  %v283 = vcvt.s32.f32 %v267
  %v284 = vcvt.s32.f32 %v268
  %v285 = vcvt.s32.f32 %v269
  %v286 = vcvt.s32.f32 %v270
  %v287 = vcvt.s32.f32 %v271
  %v288 = vcvt.s32.f32 %v272
  %v289 = vcvt.s32.f32 %v273
  %v290 = vld [vmem:[%s0] sm:$0xff]
  %v291 = vld [vmem:[%s0 + $0x8] sm:$0xff]
  %v292 = vld [vmem:[%s0 + $0x10] sm:$0xff]
  %v293 = vld [vmem:[%s0 + $0x18] sm:$0xff]
  %v294 = vld [vmem:[%s0 + $0x20] sm:$0xff]
  %v295 = vpack.c.bf16 %v291, %v290
  %v296 = vpack.c.bf16 %v293, %v292
  %v297 = vpack.c.bf16 %v294, %v294
  %v298 = vld [vmem:[%s1] sm:$0xf]
  %v299 = vld [vmem:[%s1 + $0x4] sm:$0xf]
  %v300 = vld [vmem:[%s1 + $0x8] sm:$0xf]
  %v301 = vld [vmem:[%s1 + $0xc] sm:$0xf]
  %v302 = vld [vmem:[%s1 + $0x10] sm:$0xf]
  %v303 = vld [vmem:[%s1 + $0x14] sm:$0xf]
  %v304 = vld [vmem:[%s1 + $0x18] sm:$0xf]
  %v305 = vld [vmem:[%s1 + $0x1c] sm:$0xf]
  %v306 = vld [vmem:[%s0 + $0x1] sm:$0xff]
  %v307 = vld [vmem:[%s0 + $0x9] sm:$0xff]
  %v308 = vld [vmem:[%s0 + $0x11] sm:$0xff]
  %v309 = vld [vmem:[%s0 + $0x19] sm:$0xff]
  %v310 = vld [vmem:[%s0 + $0x21] sm:$0xff]
  %v311 = vpack.c.bf16 %v307, %v306
  %v312 = vpack.c.bf16 %v309, %v308
  %v313 = vpack.c.bf16 %v310, %v310
  %s314 = scalar_lea.vmem %s1, 32
  %v315 = vld [vmem:[%s314] sm:$0xf]
  %v316 = vld [vmem:[%s314 + $0x4] sm:$0xf]
  %v317 = vld [vmem:[%s314 + $0x8] sm:$0xf]
  %v318 = vld [vmem:[%s314 + $0xc] sm:$0xf]
  %v319 = vld [vmem:[%s314 + $0x10] sm:$0xf]
  %v320 = vld [vmem:[%s314 + $0x14] sm:$0xf]
  %v321 = vld [vmem:[%s314 + $0x18] sm:$0xf]
  %v322 = vld [vmem:[%s314 + $0x1c] sm:$0xf]
  %v331 = vunpack.c.l.b16 %v315
  %v332 = vunpack.c.l.b16 %v316
  %v333 = vunpack.c.l.b16 %v317
  %v334 = vunpack.c.l.b16 %v318
  %v335 = vunpack.c.l.b16 %v319
  %v336 = vunpack.c.l.b16 %v320
  %v337 = vunpack.c.l.b16 %v321
  %v338 = vunpack.c.l.b16 %v322
  %v339 = vpack.c.b16 %v332, %v331
  %v340 = vpack.c.b16 %v334, %v333
  %v341 = vpack.c.b16 %v336, %v335
  %v342 = vpack.c.b16 %v338, %v337
  %vm347 = vcmask 523264
  %v349 = vsel %vm347, %v311, 0
  %v352 = vsel %vm347, %v312, 0
  %v355 = vsel %vm347, %v313, 0
  %357 = vmatprep.subr.bf16.mxu0 0
  %358 = vmatpush1.bf16.msra.mxu0 0
  %359 = vmatprep.subr.bf16.mxu0 0
  %360 = vmatpush1.bf16.msra.mxu0 0
  %361 = vmatprep.subr.bf16.mxu0 0
  %362 = vmatpush1.bf16.msra.mxu0 0
  %363 = vmatprep.subr.bf16.mxu0 0
  %364 = vmatpush1.bf16.msra.mxu0 0
  %365 = vmatprep.subr.bf16.mxu0 0
  %366 = vmatpush1.bf16.msra.mxu0 %v342
  %367 = vmatprep.subr.bf16.mxu0 0
  %368 = vmatpush1.bf16.msra.mxu0 %v341
  %369 = vmatprep.subr.bf16.mxu0 0
  %370 = vmatpush1.bf16.msra.mxu0 %v340
  %371 = vmatprep.subr.bf16.mxu0 0
  %372 = vmatpush1.bf16.msra.mxu0 %v339
  %373 = vmatprep.subr.bf16.mxu0 0
  %374 = vmatpush2.bf16.msra.mxu0 0
  %375 = vmatprep.subr.bf16.mxu0 0
  %376 = vmatpush2.bf16.msra.mxu0 0
  %377 = vmatprep.subr.bf16.mxu0 0
  %378 = vmatpush2.bf16.msra.mxu0 0
  %379 = vmatprep.subr.bf16.mxu0 0
  %380 = vmatpush2.bf16.msra.mxu0 0
  %381 = vmatprep.subr.bf16.mxu0 0
  %382 = vmatpush2.bf16.msra.mxu0 0
  %383 = vmatprep.subr.bf16.mxu0 0
  %384 = vmatpush2.bf16.msra.mxu0 0
  %385 = vmatprep.subr.bf16.mxu0 0
  %386 = vmatpush2.bf16.msra.mxu0 0
  %387 = vmatprep.subr.bf16.mxu0 0
  %388 = vmatpush2.bf16.msra.mxu0 0
  %389 = vmatprep.mubr.bf16.mxu0 0
  %390 = vmatmul.mubr.bf16.gmra.mxu0 %v349
  %v391 = vpop.f32.mrf.mxu0
  %v392 = vadd.f32 0.0, %v391
  %v393 = vpop.f32.mrf.mxu0
  %v394 = vpop.f32.mrf.mxu0
  %v395 = vadd.f32 0.0, %v394
  %v396 = vpop.f32.mrf.mxu0
  %397 = vmatprep.mubr.bf16.mxu0 0
  %398 = vmatmul.mubr.bf16.gmra.mxu0 %v352
  %v399 = vpop.f32.mrf.mxu0
  %v400 = vpop.f32.mrf.mxu0
  %v401 = vpop.f32.mrf.mxu0
  %v402 = vadd.f32 0.0, %v401
  %v403 = vpop.f32.mrf.mxu0
  %404 = vmatprep.mubr.bf16.mxu0 0
  %405 = vmatmul.mubr.bf16.gmra.mxu0 %v355
  %v406 = vpop.f32.mrf.mxu0
  %v407 = vadd.f32 0.0, %v406
  %v408 = vpop.f32.mrf.mxu0
  %v409 = vpop.f32.mrf.mxu0
  %v410 = vpop.f32.mrf.mxu0
  %411 = vdwg.mxu0
  %v420 = vunpack.c.l.b16 %v298
  %v421 = vunpack.c.l.b16 %v299
  %v422 = vunpack.c.l.b16 %v300
  %v423 = vunpack.c.l.b16 %v301
  %v424 = vunpack.c.l.b16 %v302
  %v425 = vunpack.c.l.b16 %v303
  %v426 = vunpack.c.l.b16 %v304
  %v427 = vunpack.c.l.b16 %v305
  %v428 = vpack.c.b16 %v421, %v420
  %v429 = vpack.c.b16 %v423, %v422
  %v430 = vpack.c.b16 %v425, %v424
  %v431 = vpack.c.b16 %v427, %v426
  %v437 = vsel %vm347, %v295, 0
  %v440 = vsel %vm347, %v296, 0
  %v443 = vsel %vm347, %v297, 0
  %445 = vmatprep.subr.bf16.mxu0 0
  %446 = vmatpush1.bf16.msra.mxu0 0
  %447 = vmatprep.subr.bf16.mxu0 0
  %448 = vmatpush1.bf16.msra.mxu0 0
  %449 = vmatprep.subr.bf16.mxu0 0
  %450 = vmatpush1.bf16.msra.mxu0 0
  %451 = vmatprep.subr.bf16.mxu0 0
  %452 = vmatpush1.bf16.msra.mxu0 0
  %453 = vmatprep.subr.bf16.mxu0 0
  %454 = vmatpush1.bf16.msra.mxu0 %v431
  %455 = vmatprep.subr.bf16.mxu0 0
  %456 = vmatpush1.bf16.msra.mxu0 %v430
  %457 = vmatprep.subr.bf16.mxu0 0
  %458 = vmatpush1.bf16.msra.mxu0 %v429
  %459 = vmatprep.subr.bf16.mxu0 0
  %460 = vmatpush1.bf16.msra.mxu0 %v428
  %461 = vmatprep.subr.bf16.mxu0 0
  %462 = vmatpush2.bf16.msra.mxu0 0
  %463 = vmatprep.subr.bf16.mxu0 0
  %464 = vmatpush2.bf16.msra.mxu0 0
  %465 = vmatprep.subr.bf16.mxu0 0
  %466 = vmatpush2.bf16.msra.mxu0 0
  %467 = vmatprep.subr.bf16.mxu0 0
  %468 = vmatpush2.bf16.msra.mxu0 0
  %469 = vmatprep.subr.bf16.mxu0 0
  %470 = vmatpush2.bf16.msra.mxu0 0
  %471 = vmatprep.subr.bf16.mxu0 0
  %472 = vmatpush2.bf16.msra.mxu0 0
  %473 = vmatprep.subr.bf16.mxu0 0
  %474 = vmatpush2.bf16.msra.mxu0 0
  %475 = vmatprep.subr.bf16.mxu0 0
  %476 = vmatpush2.bf16.msra.mxu0 0
  %477 = vmatprep.mubr.bf16.mxu0 0
  %478 = vmatmul.mubr.bf16.gmra.mxu0 %v437
  %v479 = vpop.f32.mrf.mxu0
  %v480 = vadd.f32 %v392, %v479
  %v481 = vpop.f32.mrf.mxu0
  %v482 = vpop.f32.mrf.mxu0
  %v483 = vadd.f32 %v395, %v482
  %v484 = vpop.f32.mrf.mxu0
  %485 = vmatprep.mubr.bf16.mxu0 0
  %486 = vmatmul.mubr.bf16.gmra.mxu0 %v440
  %v487 = vpop.f32.mrf.mxu0
  %v488 = vpop.f32.mrf.mxu0
  %v489 = vpop.f32.mrf.mxu0
  %v490 = vadd.f32 %v402, %v489
  %v491 = vpop.f32.mrf.mxu0
  %492 = vmatprep.mubr.bf16.mxu0 0
  %493 = vmatmul.mubr.bf16.gmra.mxu0 %v443
  %v494 = vpop.f32.mrf.mxu0
  %v495 = vadd.f32 %v407, %v494
  %v496 = vpop.f32.mrf.mxu0
  %v497 = vpop.f32.mrf.mxu0
  %v498 = vpop.f32.mrf.mxu0
  %499 = vdwg.mxu0
  %v500 = vld [vmem:[%s0 + $0x2] sm:$0xff]
  %v501 = vld [vmem:[%s0 + $0xa] sm:$0xff]
  %v502 = vld [vmem:[%s0 + $0x12] sm:$0xff]
  %v503 = vld [vmem:[%s0 + $0x1a] sm:$0xff]
  %v504 = vld [vmem:[%s0 + $0x22] sm:$0xff]
  %v505 = vpack.c.bf16 %v501, %v500
  %v506 = vpack.c.bf16 %v503, %v502
  %v507 = vpack.c.bf16 %v504, %v504
  %s508 = scalar_lea.vmem %s1, 64
  %v509 = vld [vmem:[%s508] sm:$0xf]
  %v510 = vld [vmem:[%s508 + $0x4] sm:$0xf]
  %v511 = vld [vmem:[%s508 + $0x8] sm:$0xf]
  %v512 = vld [vmem:[%s508 + $0xc] sm:$0xf]
  %v513 = vld [vmem:[%s508 + $0x10] sm:$0xf]
  %v514 = vld [vmem:[%s508 + $0x14] sm:$0xf]
  %v515 = vld [vmem:[%s508 + $0x18] sm:$0xf]
  %v516 = vld [vmem:[%s508 + $0x1c] sm:$0xf]
  %v525 = vunpack.c.l.b16 %v509
  %v526 = vunpack.c.l.b16 %v510
  %v527 = vunpack.c.l.b16 %v511
  %v528 = vunpack.c.l.b16 %v512
  %v529 = vunpack.c.l.b16 %v513
  %v530 = vunpack.c.l.b16 %v514
  %v531 = vunpack.c.l.b16 %v515
  %v532 = vunpack.c.l.b16 %v516
  %v533 = vpack.c.b16 %v526, %v525
  %v534 = vpack.c.b16 %v528, %v527
  %v535 = vpack.c.b16 %v530, %v529
  %v536 = vpack.c.b16 %v532, %v531
  %v542 = vsel %vm347, %v505, 0
  %v545 = vsel %vm347, %v506, 0
  %v548 = vsel %vm347, %v507, 0
  %550 = vmatprep.subr.bf16.mxu0 0
  %551 = vmatpush1.bf16.msra.mxu0 0
  %552 = vmatprep.subr.bf16.mxu0 0
  %553 = vmatpush1.bf16.msra.mxu0 0
  %554 = vmatprep.subr.bf16.mxu0 0
  %555 = vmatpush1.bf16.msra.mxu0 0
  %556 = vmatprep.subr.bf16.mxu0 0
  %557 = vmatpush1.bf16.msra.mxu0 0
  %558 = vmatprep.subr.bf16.mxu0 0
  %559 = vmatpush1.bf16.msra.mxu0 %v536
  %560 = vmatprep.subr.bf16.mxu0 0
  %561 = vmatpush1.bf16.msra.mxu0 %v535
  %562 = vmatprep.subr.bf16.mxu0 0
  %563 = vmatpush1.bf16.msra.mxu0 %v534
  %564 = vmatprep.subr.bf16.mxu0 0
  %565 = vmatpush1.bf16.msra.mxu0 %v533
  %566 = vmatprep.subr.bf16.mxu0 0
  %567 = vmatpush2.bf16.msra.mxu0 0
  %568 = vmatprep.subr.bf16.mxu0 0
  %569 = vmatpush2.bf16.msra.mxu0 0
  %570 = vmatprep.subr.bf16.mxu0 0
  %571 = vmatpush2.bf16.msra.mxu0 0
  %572 = vmatprep.subr.bf16.mxu0 0
  %573 = vmatpush2.bf16.msra.mxu0 0
  %574 = vmatprep.subr.bf16.mxu0 0
  %575 = vmatpush2.bf16.msra.mxu0 0
  %576 = vmatprep.subr.bf16.mxu0 0
  %577 = vmatpush2.bf16.msra.mxu0 0
  %578 = vmatprep.subr.bf16.mxu0 0
  %579 = vmatpush2.bf16.msra.mxu0 0
  %580 = vmatprep.subr.bf16.mxu0 0
  %581 = vmatpush2.bf16.msra.mxu0 0
  %582 = vmatprep.mubr.bf16.mxu0 0
  %583 = vmatmul.mubr.bf16.gmra.mxu0 %v542
  %v584 = vpop.f32.mrf.mxu0
  %v585 = vadd.f32 0.0, %v584
  %v586 = vpop.f32.mrf.mxu0
  %v587 = vpop.f32.mrf.mxu0
  %v588 = vadd.f32 0.0, %v587
  %v589 = vpop.f32.mrf.mxu0
  %590 = vmatprep.mubr.bf16.mxu0 0
  %591 = vmatmul.mubr.bf16.gmra.mxu0 %v545
  %v592 = vpop.f32.mrf.mxu0
  %v593 = vpop.f32.mrf.mxu0
  %v594 = vpop.f32.mrf.mxu0
  %v595 = vadd.f32 0.0, %v594
  %v596 = vpop.f32.mrf.mxu0
  %597 = vmatprep.mubr.bf16.mxu0 0
  %598 = vmatmul.mubr.bf16.gmra.mxu0 %v548
  %v599 = vpop.f32.mrf.mxu0
  %v600 = vadd.f32 0.0, %v599
  %v601 = vpop.f32.mrf.mxu0
  %v602 = vpop.f32.mrf.mxu0
  %v603 = vpop.f32.mrf.mxu0
  %604 = vdwg.mxu0
  %v605 = vadd.f32 %v480, %v585
  %v606 = vadd.f32 %v483, %v588
  %v607 = vadd.f32 %v490, %v595
  %v608 = vadd.f32 %v495, %v600
  %v609 = vld [vmem:[%s0 + $0x3] sm:$0xff]
  %v610 = vld [vmem:[%s0 + $0xb] sm:$0xff]
  %v611 = vld [vmem:[%s0 + $0x13] sm:$0xff]
  %v612 = vld [vmem:[%s0 + $0x1b] sm:$0xff]
  %v613 = vld [vmem:[%s0 + $0x23] sm:$0xff]
  %v614 = vpack.c.bf16 %v610, %v609
  %v615 = vpack.c.bf16 %v612, %v611
  %v616 = vpack.c.bf16 %v613, %v613
  %s617 = scalar_lea.vmem %s1, 96
  %v618 = vld [vmem:[%s617] sm:$0xf]
  %v619 = vld [vmem:[%s617 + $0x4] sm:$0xf]
  %v620 = vld [vmem:[%s617 + $0x8] sm:$0xf]
  %v621 = vld [vmem:[%s617 + $0xc] sm:$0xf]
  %v622 = vld [vmem:[%s617 + $0x10] sm:$0xf]
  %v623 = vld [vmem:[%s617 + $0x14] sm:$0xf]
  %v624 = vld [vmem:[%s617 + $0x18] sm:$0xf]
  %v625 = vld [vmem:[%s617 + $0x1c] sm:$0xf]
  %v634 = vunpack.c.l.b16 %v618
  %v635 = vunpack.c.l.b16 %v619
  %v636 = vunpack.c.l.b16 %v620
  %v637 = vunpack.c.l.b16 %v621
  %v638 = vunpack.c.l.b16 %v622
  %v639 = vunpack.c.l.b16 %v623
  %v640 = vunpack.c.l.b16 %v624
  %v641 = vunpack.c.l.b16 %v625
  %v642 = vpack.c.b16 %v635, %v634
  %v643 = vpack.c.b16 %v637, %v636
  %v644 = vpack.c.b16 %v639, %v638
  %v645 = vpack.c.b16 %v641, %v640
  %v651 = vsel %vm347, %v614, 0
  %v654 = vsel %vm347, %v615, 0
  %v657 = vsel %vm347, %v616, 0
  %659 = vmatprep.subr.bf16.mxu0 0
  %660 = vmatpush1.bf16.msra.mxu0 0
  %661 = vmatprep.subr.bf16.mxu0 0
  %662 = vmatpush1.bf16.msra.mxu0 0
  %663 = vmatprep.subr.bf16.mxu0 0
  %664 = vmatpush1.bf16.msra.mxu0 0
  %665 = vmatprep.subr.bf16.mxu0 0
  %666 = vmatpush1.bf16.msra.mxu0 0
  %667 = vmatprep.subr.bf16.mxu0 0
  %668 = vmatpush1.bf16.msra.mxu0 %v645
  %669 = vmatprep.subr.bf16.mxu0 0
  %670 = vmatpush1.bf16.msra.mxu0 %v644
  %671 = vmatprep.subr.bf16.mxu0 0
  %672 = vmatpush1.bf16.msra.mxu0 %v643
  %673 = vmatprep.subr.bf16.mxu0 0
  %674 = vmatpush1.bf16.msra.mxu0 %v642
  %675 = vmatprep.subr.bf16.mxu0 0
  %676 = vmatpush2.bf16.msra.mxu0 0
  %677 = vmatprep.subr.bf16.mxu0 0
  %678 = vmatpush2.bf16.msra.mxu0 0
  %679 = vmatprep.subr.bf16.mxu0 0
  %680 = vmatpush2.bf16.msra.mxu0 0
  %681 = vmatprep.subr.bf16.mxu0 0
  %682 = vmatpush2.bf16.msra.mxu0 0
  %683 = vmatprep.subr.bf16.mxu0 0
  %684 = vmatpush2.bf16.msra.mxu0 0
  %685 = vmatprep.subr.bf16.mxu0 0
  %686 = vmatpush2.bf16.msra.mxu0 0
  %687 = vmatprep.subr.bf16.mxu0 0
  %688 = vmatpush2.bf16.msra.mxu0 0
  %689 = vmatprep.subr.bf16.mxu0 0
  %690 = vmatpush2.bf16.msra.mxu0 0
  %691 = vmatprep.mubr.bf16.mxu0 0
  %692 = vmatmul.mubr.bf16.gmra.mxu0 %v651
  %v693 = vpop.f32.mrf.mxu0
  %v694 = vadd.f32 0.0, %v693
  %v695 = vpop.f32.mrf.mxu0
  %v696 = vpop.f32.mrf.mxu0
  %v697 = vadd.f32 0.0, %v696
  %v698 = vpop.f32.mrf.mxu0
  %699 = vmatprep.mubr.bf16.mxu0 0
  %700 = vmatmul.mubr.bf16.gmra.mxu0 %v654
  %v701 = vpop.f32.mrf.mxu0
  %v702 = vpop.f32.mrf.mxu0
  %v703 = vpop.f32.mrf.mxu0
  %v704 = vadd.f32 0.0, %v703
  %v705 = vpop.f32.mrf.mxu0
  %706 = vmatprep.mubr.bf16.mxu0 0
  %707 = vmatmul.mubr.bf16.gmra.mxu0 %v657
  %v708 = vpop.f32.mrf.mxu0
  %v709 = vadd.f32 0.0, %v708
  %v710 = vpop.f32.mrf.mxu0
  %v711 = vpop.f32.mrf.mxu0
  %v712 = vpop.f32.mrf.mxu0
  %713 = vdwg.mxu0
  %v714 = vadd.f32 %v605, %v694
  %v715 = vadd.f32 %v606, %v697
  %v716 = vadd.f32 %v607, %v704
  %v717 = vadd.f32 %v608, %v709
  %v718 = vld [vmem:[%s0 + $0x4] sm:$0xff]
  %v719 = vld [vmem:[%s0 + $0xc] sm:$0xff]
  %v720 = vld [vmem:[%s0 + $0x14] sm:$0xff]
  %v721 = vld [vmem:[%s0 + $0x1c] sm:$0xff]
  %v722 = vld [vmem:[%s0 + $0x24] sm:$0xff]
  %v723 = vpack.c.bf16 %v719, %v718
  %v724 = vpack.c.bf16 %v721, %v720
  %v725 = vpack.c.bf16 %v722, %v722
  %s726 = scalar_lea.vmem %s1, 128
  %v727 = vld [vmem:[%s726] sm:$0xf]
  %v728 = vld [vmem:[%s726 + $0x4] sm:$0xf]
  %v729 = vld [vmem:[%s726 + $0x8] sm:$0xf]
  %v730 = vld [vmem:[%s726 + $0xc] sm:$0xf]
  %v731 = vld [vmem:[%s726 + $0x10] sm:$0xf]
  %v732 = vld [vmem:[%s726 + $0x14] sm:$0xf]
  %v733 = vld [vmem:[%s726 + $0x18] sm:$0xf]
  %v734 = vld [vmem:[%s726 + $0x1c] sm:$0xf]
  %v743 = vunpack.c.l.b16 %v727
  %v744 = vunpack.c.l.b16 %v728
  %v745 = vunpack.c.l.b16 %v729
  %v746 = vunpack.c.l.b16 %v730
  %v747 = vunpack.c.l.b16 %v731
  %v748 = vunpack.c.l.b16 %v732
  %v749 = vunpack.c.l.b16 %v733
  %v750 = vunpack.c.l.b16 %v734
  %v751 = vpack.c.b16 %v744, %v743
  %v752 = vpack.c.b16 %v746, %v745
  %v753 = vpack.c.b16 %v748, %v747
  %v754 = vpack.c.b16 %v750, %v749
  %v760 = vsel %vm347, %v723, 0
  %v763 = vsel %vm347, %v724, 0
  %v766 = vsel %vm347, %v725, 0
  %768 = vmatprep.subr.bf16.mxu0 0
  %769 = vmatpush1.bf16.msra.mxu0 0
  %770 = vmatprep.subr.bf16.mxu0 0
  %771 = vmatpush1.bf16.msra.mxu0 0
  %772 = vmatprep.subr.bf16.mxu0 0
  %773 = vmatpush1.bf16.msra.mxu0 0
  %774 = vmatprep.subr.bf16.mxu0 0
  %775 = vmatpush1.bf16.msra.mxu0 0
  %776 = vmatprep.subr.bf16.mxu0 0
  %777 = vmatpush1.bf16.msra.mxu0 %v754
  %778 = vmatprep.subr.bf16.mxu0 0
  %779 = vmatpush1.bf16.msra.mxu0 %v753
  %780 = vmatprep.subr.bf16.mxu0 0
  %781 = vmatpush1.bf16.msra.mxu0 %v752
  %782 = vmatprep.subr.bf16.mxu0 0
  %783 = vmatpush1.bf16.msra.mxu0 %v751
  %784 = vmatprep.subr.bf16.mxu0 0
  %785 = vmatpush2.bf16.msra.mxu0 0
  %786 = vmatprep.subr.bf16.mxu0 0
  %787 = vmatpush2.bf16.msra.mxu0 0
  %788 = vmatprep.subr.bf16.mxu0 0
  %789 = vmatpush2.bf16.msra.mxu0 0
  %790 = vmatprep.subr.bf16.mxu0 0
  %791 = vmatpush2.bf16.msra.mxu0 0
  %792 = vmatprep.subr.bf16.mxu0 0
  %793 = vmatpush2.bf16.msra.mxu0 0
  %794 = vmatprep.subr.bf16.mxu0 0
  %795 = vmatpush2.bf16.msra.mxu0 0
  %796 = vmatprep.subr.bf16.mxu0 0
  %797 = vmatpush2.bf16.msra.mxu0 0
  %798 = vmatprep.subr.bf16.mxu0 0
  %799 = vmatpush2.bf16.msra.mxu0 0
  %800 = vmatprep.mubr.bf16.mxu0 0
  %801 = vmatmul.mubr.bf16.gmra.mxu0 %v760
  %v802 = vpop.f32.mrf.mxu0
  %v803 = vadd.f32 0.0, %v802
  %v804 = vpop.f32.mrf.mxu0
  %v805 = vpop.f32.mrf.mxu0
  %v806 = vadd.f32 0.0, %v805
  %v807 = vpop.f32.mrf.mxu0
  %808 = vmatprep.mubr.bf16.mxu0 0
  %809 = vmatmul.mubr.bf16.gmra.mxu0 %v763
  %v810 = vpop.f32.mrf.mxu0
  %v811 = vpop.f32.mrf.mxu0
  %v812 = vpop.f32.mrf.mxu0
  %v813 = vadd.f32 0.0, %v812
  %v814 = vpop.f32.mrf.mxu0
  %815 = vmatprep.mubr.bf16.mxu0 0
  %816 = vmatmul.mubr.bf16.gmra.mxu0 %v766
  %v817 = vpop.f32.mrf.mxu0
  %v818 = vadd.f32 0.0, %v817
  %v819 = vpop.f32.mrf.mxu0
  %v820 = vpop.f32.mrf.mxu0
  %v821 = vpop.f32.mrf.mxu0
  %822 = vdwg.mxu0
  %v823 = vadd.f32 %v714, %v803
  %v824 = vadd.f32 %v715, %v806
  %v825 = vadd.f32 %v716, %v813
  %v826 = vadd.f32 %v717, %v818
  %v827 = vadd.f32 %v823, %v824
  %v828 = vadd.f32 %v827, %v825
  %v829 = vadd.f32 %v828, %v826
  %v830 = vrot.slane %v829, 4
  %v831 = vadd.f32 %v829, %v830
  %v832 = vrot.slane %v831, 2
  %v833 = vadd.f32 %v831, %v832
  %v834 = vrot.slane %v833, 1
  %v835 = vadd.f32 %v833, %v834
  %836 = vmatprep.subr.mxu0 0.0
  %837 = vmatpush1.msra.mxu0 %v289
  %838 = vmatprep.subr.mxu0 0.0
  %839 = vmatpush1.msra.mxu0 %v288
  %840 = vmatprep.subr.mxu0 0.0
  %841 = vmatpush1.msra.mxu0 %v287
  %842 = vmatprep.subr.mxu0 0.0
  %843 = vmatpush1.msra.mxu0 %v286
  %844 = vmatprep.subr.mxu0 0.0
  %845 = vmatpush1.msra.mxu0 %v285
  %846 = vmatprep.subr.mxu0 0.0
  %847 = vmatpush1.msra.mxu0 %v284
  %848 = vmatprep.subr.mxu0 0.0
  %849 = vmatpush1.msra.mxu0 %v283
  %850 = vmatprep.subr.mxu0 0.0
  %851 = vmatpush1.msra.mxu0 %v282
  %852 = vmatprep.subr.mxu0 0.0
  %853 = vmatpush1.msra.mxu0 %v281
  %854 = vmatprep.subr.mxu0 0.0
  %855 = vmatpush1.msra.mxu0 %v280
  %856 = vmatprep.subr.mxu0 0.0
  %857 = vmatpush1.msra.mxu0 %v279
  %858 = vmatprep.subr.mxu0 0.0
  %859 = vmatpush1.msra.mxu0 %v278
  %860 = vmatprep.subr.mxu0 0.0
  %861 = vmatpush1.msra.mxu0 %v277
  %862 = vmatprep.subr.mxu0 0.0
  %863 = vmatpush1.msra.mxu0 %v276
  %864 = vmatprep.subr.mxu0 0.0
  %865 = vmatpush1.msra.mxu0 %v275
  %866 = vmatprep.subr.mxu0 0.0
  %867 = vmatpush1.msra.mxu0 %v274
  %868 = vmatprep.subr.mxu0 0.0
  %869 = vmatpush2.msra.mxu0 0.0
  %870 = vmatprep.subr.mxu0 0.0
  %871 = vmatpush2.msra.mxu0 0.0
  %872 = vmatprep.subr.mxu0 0.0
  %873 = vmatpush2.msra.mxu0 0.0
  %874 = vmatprep.subr.mxu0 0.0
  %875 = vmatpush2.msra.mxu0 0.0
  %876 = vmatprep.subr.mxu0 0.0
  %877 = vmatpush2.msra.mxu0 0.0
  %878 = vmatprep.subr.mxu0 0.0
  %879 = vmatpush2.msra.mxu0 0.0
  %880 = vmatprep.subr.mxu0 0.0
  %881 = vmatpush2.msra.mxu0 0.0
  %882 = vmatprep.subr.mxu0 0.0
  %883 = vmatpush2.msra.mxu0 0.0
  %884 = vmatprep.subr.mxu0 0.0
  %885 = vmatpush2.msra.mxu0 0.0
  %886 = vmatprep.subr.mxu0 0.0
  %887 = vmatpush2.msra.mxu0 0.0
  %888 = vmatprep.subr.mxu0 0.0
  %889 = vmatpush2.msra.mxu0 0.0
  %890 = vmatprep.subr.mxu0 0.0
  %891 = vmatpush2.msra.mxu0 0.0
  %892 = vmatprep.subr.mxu0 0.0
  %893 = vmatpush2.msra.mxu0 0.0
  %894 = vmatprep.subr.mxu0 0.0
  %895 = vmatpush2.msra.mxu0 0.0
  %896 = vmatprep.subr.mxu0 0.0
  %897 = vmatpush2.msra.mxu0 0.0
  %898 = vmatprep.subr.mxu0 0.0
  %899 = vmatpush2.msra.mxu0 0.0
  %900 = vmatprep.mubr.f32.mxu0 0.0
  %901 = vmatmul.mubr.f32.gmra.mxu0 %v835
  %v902 = vpop.f32.mrf.mxu0
  %v903 = vadd.f32 0.0, %v902
  %v904 = vpop.f32.mrf.mxu0
  %905 = vdwg.mxu0
  %v906 = vmul.f32 %v903, 0.001953125
  %v907 = vlaneseq
  %v908 = vshrl.u32 %v907, 7
  %v909 = vsub.s32 0, %v908
  %v910 = vrot.slane %v906, %v909
  %v911 = vsub.f32 %v823, %v910
  %v912 = vsub.f32 %v824, %v910
  %v913 = vsub.f32 %v825, %v910
  %v914 = vsub.f32 %v826, %v910
  %v915 = vmul.f32 %v911, %v911
  %v916 = vmul.f32 %v912, %v912
  %v917 = vmul.f32 %v913, %v913
  %v918 = vmul.f32 %v914, %v914
  %v919 = vadd.f32 %v915, %v916
  %v920 = vadd.f32 %v919, %v917
  %v921 = vadd.f32 %v920, %v918
  %v922 = vrot.slane %v921, 4
  %v923 = vadd.f32 %v921, %v922
  %v924 = vrot.slane %v923, 2
  %v925 = vadd.f32 %v923, %v924
  %v926 = vrot.slane %v925, 1
  %v927 = vadd.f32 %v925, %v926
  %928 = vmatprep.subr.mxu0 0.0
  %929 = vmatpush1.msra.mxu0 %v289
  %930 = vmatprep.subr.mxu0 0.0
  %931 = vmatpush1.msra.mxu0 %v288
  %932 = vmatprep.subr.mxu0 0.0
  %933 = vmatpush1.msra.mxu0 %v287
  %934 = vmatprep.subr.mxu0 0.0
  %935 = vmatpush1.msra.mxu0 %v286
  %936 = vmatprep.subr.mxu0 0.0
  %937 = vmatpush1.msra.mxu0 %v285
  %938 = vmatprep.subr.mxu0 0.0
  %939 = vmatpush1.msra.mxu0 %v284
  %940 = vmatprep.subr.mxu0 0.0
  %941 = vmatpush1.msra.mxu0 %v283
  %942 = vmatprep.subr.mxu0 0.0
  %943 = vmatpush1.msra.mxu0 %v282
  %944 = vmatprep.subr.mxu0 0.0
  %945 = vmatpush1.msra.mxu0 %v281
  %946 = vmatprep.subr.mxu0 0.0
  %947 = vmatpush1.msra.mxu0 %v280
  %948 = vmatprep.subr.mxu0 0.0
  %949 = vmatpush1.msra.mxu0 %v279
  %950 = vmatprep.subr.mxu0 0.0
  %951 = vmatpush1.msra.mxu0 %v278
  %952 = vmatprep.subr.mxu0 0.0
  %953 = vmatpush1.msra.mxu0 %v277
  %954 = vmatprep.subr.mxu0 0.0
  %955 = vmatpush1.msra.mxu0 %v276
  %956 = vmatprep.subr.mxu0 0.0
  %957 = vmatpush1.msra.mxu0 %v275
  %958 = vmatprep.subr.mxu0 0.0
  %959 = vmatpush1.msra.mxu0 %v274
  %960 = vmatprep.subr.mxu0 0.0
  %961 = vmatpush2.msra.mxu0 0.0
  %962 = vmatprep.subr.mxu0 0.0
  %963 = vmatpush2.msra.mxu0 0.0
  %964 = vmatprep.subr.mxu0 0.0
  %965 = vmatpush2.msra.mxu0 0.0
  %966 = vmatprep.subr.mxu0 0.0
  %967 = vmatpush2.msra.mxu0 0.0
  %968 = vmatprep.subr.mxu0 0.0
  %969 = vmatpush2.msra.mxu0 0.0
  %970 = vmatprep.subr.mxu0 0.0
  %971 = vmatpush2.msra.mxu0 0.0
  %972 = vmatprep.subr.mxu0 0.0
  %973 = vmatpush2.msra.mxu0 0.0
  %974 = vmatprep.subr.mxu0 0.0
  %975 = vmatpush2.msra.mxu0 0.0
  %976 = vmatprep.subr.mxu0 0.0
  %977 = vmatpush2.msra.mxu0 0.0
  %978 = vmatprep.subr.mxu0 0.0
  %979 = vmatpush2.msra.mxu0 0.0
  %980 = vmatprep.subr.mxu0 0.0
  %981 = vmatpush2.msra.mxu0 0.0
  %982 = vmatprep.subr.mxu0 0.0
  %983 = vmatpush2.msra.mxu0 0.0
  %984 = vmatprep.subr.mxu0 0.0
  %985 = vmatpush2.msra.mxu0 0.0
  %986 = vmatprep.subr.mxu0 0.0
  %987 = vmatpush2.msra.mxu0 0.0
  %988 = vmatprep.subr.mxu0 0.0
  %989 = vmatpush2.msra.mxu0 0.0
  %990 = vmatprep.subr.mxu0 0.0
  %991 = vmatpush2.msra.mxu0 0.0
  %992 = vmatprep.mubr.f32.mxu0 0.0
  %993 = vmatmul.mubr.f32.gmra.mxu0 %v927
  %v994 = vpop.f32.mrf.mxu0
  %v995 = vadd.f32 0.0, %v994
  %v996 = vpop.f32.mrf.mxu0
  %997 = vdwg.mxu0
  %v998 = vmul.f32 %v995, 0.001953125
  %v999 = vadd.f32 %v998, 1e-05
  %v1000 = vrsqrt.pop %v999
  %v1001 = vmul.f32 %v18, %v1000
  %v1002 = vlaneseq
  %v1003 = vshrl.u32 %v1002, 7
  %v1004 = vsub.s32 0, %v1003
  %v1005 = vrot.slane %v1001, %v1004
  %v1006 = vmul.f32 %v911, %v1005
  %v1007 = vmul.f32 %v912, %v1005
  %v1008 = vmul.f32 %v913, %v1005
  %v1009 = vmul.f32 %v914, %v1005
  %v1010 = vlaneseq
  %v1011 = vshrl.u32 %v1010, 7
  %v1012 = vsub.s32 1, %v1011
  %v1013 = vrot.slane %v18, %v1012
  %v1014 = vadd.f32 %v1006, %v1013
  %v1015 = vadd.f32 %v1007, %v1013
  %v1016 = vadd.f32 %v1008, %v1013
  %v1017 = vadd.f32 %v1009, %v1013
  %v1018 = vmax.f32 %v1014, 0.0
  %v1019 = vmax.f32 %v1015, 0.0
  %v1020 = vmax.f32 %v1016, 0.0
  %v1021 = vmax.f32 %v1017, 0.0
  %1022 = vst [vmem:[#allocation2] sm:$0x3] 0.0
  %1023 = vst [vmem:[#allocation2 + $0x2] sm:$0xff] %v1018
  %1024 = vst [vmem:[#allocation2 + $0xa] sm:$0xff] %v1019
  %1025 = vst [vmem:[#allocation2 + $0x12] sm:$0x3f] 0.0
  %1026 = vst [vmem:[#allocation2 + $0x18] sm:$0x3] 0.0
  %1027 = vst [vmem:[#allocation2 + $0x1a] sm:$0xff] %v1020
  %1028 = vst [vmem:[#allocation2 + $0x22] sm:$0xff] %v1021
  %1029 = vst [vmem:[#allocation2 + $0x2a] sm:$0x3f] 0.0
  %v1030 = vld [vmem:[#allocation2] sm:$0xff]
  %v1031 = vld [vmem:[#allocation2 + $0x8] sm:$0xff]
  %v1032 = vld [vmem:[#allocation2 + $0x10] sm:$0xff]
  %v1033 = vld [vmem:[#allocation2 + $0x18] sm:$0xff]
  %v1034 = vld [vmem:[#allocation2 + $0x20] sm:$0xff]
  %v1035 = vpack.c.bf16 %v1031, %v1030
  %v1036 = vpack.c.bf16 %v1033, %v1032
  %v1037 = vpack.c.bf16 %v1034, %v1034
  %v1038 = vld [vmem:[%s2] sm:$0xf]
  %v1039 = vld [vmem:[%s2 + $0x4] sm:$0xf]
  %v1040 = vld [vmem:[%s2 + $0x8] sm:$0xf]
  %v1041 = vld [vmem:[%s2 + $0xc] sm:$0xf]
  %v1042 = vld [vmem:[%s2 + $0x10] sm:$0xf]
  %v1043 = vld [vmem:[%s2 + $0x14] sm:$0xf]
  %v1044 = vld [vmem:[%s2 + $0x18] sm:$0xf]
  %v1045 = vld [vmem:[%s2 + $0x1c] sm:$0xf]
  %v1046 = vld [vmem:[%s2 + $0x20] sm:$0xf]
  %v1047 = vld [vmem:[%s2 + $0x24] sm:$0xf]
  %v1048 = vld [vmem:[%s2 + $0x28] sm:$0xf]
  %v1049 = vld [vmem:[%s2 + $0x2c] sm:$0xf]
  %v1050 = vld [vmem:[%s2 + $0x30] sm:$0xf]
  %v1051 = vld [vmem:[%s2 + $0x34] sm:$0xf]
  %v1052 = vld [vmem:[%s2 + $0x38] sm:$0xf]
  %v1053 = vld [vmem:[%s2 + $0x3c] sm:$0xf]
  %v1054 = vld [vmem:[#allocation2 + $0x1] sm:$0xff]
  %v1055 = vld [vmem:[#allocation2 + $0x9] sm:$0xff]
  %v1056 = vld [vmem:[#allocation2 + $0x11] sm:$0xff]
  %v1057 = vld [vmem:[#allocation2 + $0x19] sm:$0xff]
  %v1058 = vld [vmem:[#allocation2 + $0x21] sm:$0xff]
  %v1059 = vpack.c.bf16 %v1055, %v1054
  %v1060 = vpack.c.bf16 %v1057, %v1056
  %v1061 = vpack.c.bf16 %v1058, %v1058
  %s1062 = scalar_lea.vmem %s2, 64
  %v1063 = vld [vmem:[%s1062] sm:$0xf]
  %v1064 = vld [vmem:[%s1062 + $0x4] sm:$0xf]
  %v1065 = vld [vmem:[%s1062 + $0x8] sm:$0xf]
  %v1066 = vld [vmem:[%s1062 + $0xc] sm:$0xf]
  %v1067 = vld [vmem:[%s1062 + $0x10] sm:$0xf]
  %v1068 = vld [vmem:[%s1062 + $0x14] sm:$0xf]
  %v1069 = vld [vmem:[%s1062 + $0x18] sm:$0xf]
  %v1070 = vld [vmem:[%s1062 + $0x1c] sm:$0xf]
  %v1071 = vld [vmem:[%s1062 + $0x20] sm:$0xf]
  %v1072 = vld [vmem:[%s1062 + $0x24] sm:$0xf]
  %v1073 = vld [vmem:[%s1062 + $0x28] sm:$0xf]
  %v1074 = vld [vmem:[%s1062 + $0x2c] sm:$0xf]
  %v1075 = vld [vmem:[%s1062 + $0x30] sm:$0xf]
  %v1076 = vld [vmem:[%s1062 + $0x34] sm:$0xf]
  %v1077 = vld [vmem:[%s1062 + $0x38] sm:$0xf]
  %v1078 = vld [vmem:[%s1062 + $0x3c] sm:$0xf]
  %v1095 = vunpack.c.l.b16 %v1063
  %v1096 = vunpack.c.l.b16 %v1064
  %v1097 = vunpack.c.l.b16 %v1065
  %v1098 = vunpack.c.l.b16 %v1066
  %v1099 = vunpack.c.l.b16 %v1067
  %v1100 = vunpack.c.l.b16 %v1068
  %v1101 = vunpack.c.l.b16 %v1069
  %v1102 = vunpack.c.l.b16 %v1070
  %v1103 = vunpack.c.l.b16 %v1071
  %v1104 = vunpack.c.l.b16 %v1072
  %v1105 = vunpack.c.l.b16 %v1073
  %v1106 = vunpack.c.l.b16 %v1074
  %v1107 = vunpack.c.l.b16 %v1075
  %v1108 = vunpack.c.l.b16 %v1076
  %v1109 = vunpack.c.l.b16 %v1077
  %v1110 = vunpack.c.l.b16 %v1078
  %v1111 = vpack.c.b16 %v1096, %v1095
  %v1112 = vpack.c.b16 %v1098, %v1097
  %v1113 = vpack.c.b16 %v1100, %v1099
  %v1114 = vpack.c.b16 %v1102, %v1101
  %v1115 = vpack.c.b16 %v1104, %v1103
  %v1116 = vpack.c.b16 %v1106, %v1105
  %v1117 = vpack.c.b16 %v1108, %v1107
  %v1118 = vpack.c.b16 %v1110, %v1109
  %1127 = vmatprep.subr.bf16.mxu0 0
  %1128 = vmatpush1.bf16.msra.mxu0 %v1118
  %1129 = vmatprep.subr.bf16.mxu0 0
  %1130 = vmatpush1.bf16.msra.mxu0 %v1117
  %1131 = vmatprep.subr.bf16.mxu0 0
  %1132 = vmatpush1.bf16.msra.mxu0 %v1116
  %1133 = vmatprep.subr.bf16.mxu0 0
  %1134 = vmatpush1.bf16.msra.mxu0 %v1115
  %1135 = vmatprep.subr.bf16.mxu0 0
  %1136 = vmatpush1.bf16.msra.mxu0 %v1114
  %1137 = vmatprep.subr.bf16.mxu0 0
  %1138 = vmatpush1.bf16.msra.mxu0 %v1113
  %1139 = vmatprep.subr.bf16.mxu0 0
  %1140 = vmatpush1.bf16.msra.mxu0 %v1112
  %1141 = vmatprep.subr.bf16.mxu0 0
  %1142 = vmatpush1.bf16.msra.mxu0 %v1111
  %1143 = vmatprep.subr.bf16.mxu0 0
  %1144 = vmatpush2.bf16.msra.mxu0 0
  %1145 = vmatprep.subr.bf16.mxu0 0
  %1146 = vmatpush2.bf16.msra.mxu0 0
  %1147 = vmatprep.subr.bf16.mxu0 0
  %1148 = vmatpush2.bf16.msra.mxu0 0
  %1149 = vmatprep.subr.bf16.mxu0 0
  %1150 = vmatpush2.bf16.msra.mxu0 0
  %1151 = vmatprep.subr.bf16.mxu0 0
  %1152 = vmatpush2.bf16.msra.mxu0 0
  %1153 = vmatprep.subr.bf16.mxu0 0
  %1154 = vmatpush2.bf16.msra.mxu0 0
  %1155 = vmatprep.subr.bf16.mxu0 0
  %1156 = vmatpush2.bf16.msra.mxu0 0
  %1157 = vmatprep.subr.bf16.mxu0 0
  %1158 = vmatpush2.bf16.msra.mxu0 0
  %1159 = vmatprep.mubr.bf16.mxu0 0
  %1160 = vmatmul.mubr.bf16.gmra.mxu0 %v1059
  %v1161 = vpop.f32.mrf.mxu0
  %v1162 = vadd.f32 0.0, %v1161
  %v1163 = vpop.f32.mrf.mxu0
  %v1164 = vpop.f32.mrf.mxu0
  %v1165 = vadd.f32 0.0, %v1164
  %v1166 = vpop.f32.mrf.mxu0
  %1167 = vmatprep.mubr.bf16.mxu0 0
  %1168 = vmatmul.mubr.bf16.gmra.mxu0 %v1060
  %v1169 = vpop.f32.mrf.mxu0
  %v1170 = vpop.f32.mrf.mxu0
  %v1171 = vpop.f32.mrf.mxu0
  %v1172 = vadd.f32 0.0, %v1171
  %v1173 = vpop.f32.mrf.mxu0
  %1174 = vmatprep.mubr.bf16.mxu0 0
  %1175 = vmatmul.mubr.bf16.gmra.mxu0 %v1061
  %v1176 = vpop.f32.mrf.mxu0
  %v1177 = vadd.f32 0.0, %v1176
  %v1178 = vpop.f32.mrf.mxu0
  %v1179 = vpop.f32.mrf.mxu0
  %v1180 = vpop.f32.mrf.mxu0
  %1181 = vdwg.mxu0
  %v1198 = vunpack.c.l.b16 %v1038
  %v1199 = vunpack.c.l.b16 %v1039
  %v1200 = vunpack.c.l.b16 %v1040
  %v1201 = vunpack.c.l.b16 %v1041
  %v1202 = vunpack.c.l.b16 %v1042
  %v1203 = vunpack.c.l.b16 %v1043
  %v1204 = vunpack.c.l.b16 %v1044
  %v1205 = vunpack.c.l.b16 %v1045
  %v1206 = vunpack.c.l.b16 %v1046
  %v1207 = vunpack.c.l.b16 %v1047
  %v1208 = vunpack.c.l.b16 %v1048
  %v1209 = vunpack.c.l.b16 %v1049
  %v1210 = vunpack.c.l.b16 %v1050
  %v1211 = vunpack.c.l.b16 %v1051
  %v1212 = vunpack.c.l.b16 %v1052
  %v1213 = vunpack.c.l.b16 %v1053
  %v1214 = vpack.c.b16 %v1199, %v1198
  %v1215 = vpack.c.b16 %v1201, %v1200
  %v1216 = vpack.c.b16 %v1203, %v1202
  %v1217 = vpack.c.b16 %v1205, %v1204
  %v1218 = vpack.c.b16 %v1207, %v1206
  %v1219 = vpack.c.b16 %v1209, %v1208
  %v1220 = vpack.c.b16 %v1211, %v1210
  %v1221 = vpack.c.b16 %v1213, %v1212
  %1230 = vmatprep.subr.bf16.mxu0 0
  %1231 = vmatpush1.bf16.msra.mxu0 %v1221
  %1232 = vmatprep.subr.bf16.mxu0 0
  %1233 = vmatpush1.bf16.msra.mxu0 %v1220
  %1234 = vmatprep.subr.bf16.mxu0 0
  %1235 = vmatpush1.bf16.msra.mxu0 %v1219
  %1236 = vmatprep.subr.bf16.mxu0 0
  %1237 = vmatpush1.bf16.msra.mxu0 %v1218
  %1238 = vmatprep.subr.bf16.mxu0 0
  %1239 = vmatpush1.bf16.msra.mxu0 %v1217
  %1240 = vmatprep.subr.bf16.mxu0 0
  %1241 = vmatpush1.bf16.msra.mxu0 %v1216
  %1242 = vmatprep.subr.bf16.mxu0 0
  %1243 = vmatpush1.bf16.msra.mxu0 %v1215
  %1244 = vmatprep.subr.bf16.mxu0 0
  %1245 = vmatpush1.bf16.msra.mxu0 %v1214
  %1246 = vmatprep.subr.bf16.mxu0 0
  %1247 = vmatpush2.bf16.msra.mxu0 0
  %1248 = vmatprep.subr.bf16.mxu0 0
  %1249 = vmatpush2.bf16.msra.mxu0 0
  %1250 = vmatprep.subr.bf16.mxu0 0
  %1251 = vmatpush2.bf16.msra.mxu0 0
  %1252 = vmatprep.subr.bf16.mxu0 0
  %1253 = vmatpush2.bf16.msra.mxu0 0
  %1254 = vmatprep.subr.bf16.mxu0 0
  %1255 = vmatpush2.bf16.msra.mxu0 0
  %1256 = vmatprep.subr.bf16.mxu0 0
  %1257 = vmatpush2.bf16.msra.mxu0 0
  %1258 = vmatprep.subr.bf16.mxu0 0
  %1259 = vmatpush2.bf16.msra.mxu0 0
  %1260 = vmatprep.subr.bf16.mxu0 0
  %1261 = vmatpush2.bf16.msra.mxu0 0
  %1262 = vmatprep.mubr.bf16.mxu0 0
  %1263 = vmatmul.mubr.bf16.gmra.mxu0 %v1035
  %v1264 = vpop.f32.mrf.mxu0
  %v1265 = vadd.f32 %v1162, %v1264
  %v1266 = vpop.f32.mrf.mxu0
  %v1267 = vpop.f32.mrf.mxu0
  %v1268 = vadd.f32 %v1165, %v1267
  %v1269 = vpop.f32.mrf.mxu0
  %1270 = vmatprep.mubr.bf16.mxu0 0
  %1271 = vmatmul.mubr.bf16.gmra.mxu0 %v1036
  %v1272 = vpop.f32.mrf.mxu0
  %v1273 = vpop.f32.mrf.mxu0
  %v1274 = vpop.f32.mrf.mxu0
  %v1275 = vadd.f32 %v1172, %v1274
  %v1276 = vpop.f32.mrf.mxu0
  %1277 = vmatprep.mubr.bf16.mxu0 0
  %1278 = vmatmul.mubr.bf16.gmra.mxu0 %v1037
  %v1279 = vpop.f32.mrf.mxu0
  %v1280 = vadd.f32 %v1177, %v1279
  %v1281 = vpop.f32.mrf.mxu0
  %v1282 = vpop.f32.mrf.mxu0
  %v1283 = vpop.f32.mrf.mxu0
  %1284 = vdwg.mxu0
  %v1285 = vld [vmem:[#allocation2 + $0x2] sm:$0xff]
  %v1286 = vld [vmem:[#allocation2 + $0xa] sm:$0xff]
  %v1287 = vld [vmem:[#allocation2 + $0x12] sm:$0xff]
  %v1288 = vld [vmem:[#allocation2 + $0x1a] sm:$0xff]
  %v1289 = vld [vmem:[#allocation2 + $0x22] sm:$0xff]
  %v1290 = vpack.c.bf16 %v1286, %v1285
  %v1291 = vpack.c.bf16 %v1288, %v1287
  %v1292 = vpack.c.bf16 %v1289, %v1289
  %s1293 = scalar_lea.vmem %s2, 128
  %v1294 = vld [vmem:[%s1293] sm:$0xf]
  %v1295 = vld [vmem:[%s1293 + $0x4] sm:$0xf]
  %v1296 = vld [vmem:[%s1293 + $0x8] sm:$0xf]
  %v1297 = vld [vmem:[%s1293 + $0xc] sm:$0xf]
  %v1298 = vld [vmem:[%s1293 + $0x10] sm:$0xf]
  %v1299 = vld [vmem:[%s1293 + $0x14] sm:$0xf]
  %v1300 = vld [vmem:[%s1293 + $0x18] sm:$0xf]
  %v1301 = vld [vmem:[%s1293 + $0x1c] sm:$0xf]
  %v1302 = vld [vmem:[%s1293 + $0x20] sm:$0xf]
  %v1303 = vld [vmem:[%s1293 + $0x24] sm:$0xf]
  %v1304 = vld [vmem:[%s1293 + $0x28] sm:$0xf]
  %v1305 = vld [vmem:[%s1293 + $0x2c] sm:$0xf]
  %v1306 = vld [vmem:[%s1293 + $0x30] sm:$0xf]
  %v1307 = vld [vmem:[%s1293 + $0x34] sm:$0xf]
  %v1308 = vld [vmem:[%s1293 + $0x38] sm:$0xf]
  %v1309 = vld [vmem:[%s1293 + $0x3c] sm:$0xf]
  %v1326 = vunpack.c.l.b16 %v1294
  %v1327 = vunpack.c.l.b16 %v1295
  %v1328 = vunpack.c.l.b16 %v1296
  %v1329 = vunpack.c.l.b16 %v1297
  %v1330 = vunpack.c.l.b16 %v1298
  %v1331 = vunpack.c.l.b16 %v1299
  %v1332 = vunpack.c.l.b16 %v1300
  %v1333 = vunpack.c.l.b16 %v1301
  %v1334 = vunpack.c.l.b16 %v1302
  %v1335 = vunpack.c.l.b16 %v1303
  %v1336 = vunpack.c.l.b16 %v1304
  %v1337 = vunpack.c.l.b16 %v1305
  %v1338 = vunpack.c.l.b16 %v1306
  %v1339 = vunpack.c.l.b16 %v1307
  %v1340 = vunpack.c.l.b16 %v1308
  %v1341 = vunpack.c.l.b16 %v1309
  %v1342 = vpack.c.b16 %v1327, %v1326
  %v1343 = vpack.c.b16 %v1329, %v1328
  %v1344 = vpack.c.b16 %v1331, %v1330
  %v1345 = vpack.c.b16 %v1333, %v1332
  %v1346 = vpack.c.b16 %v1335, %v1334
  %v1347 = vpack.c.b16 %v1337, %v1336
  %v1348 = vpack.c.b16 %v1339, %v1338
  %v1349 = vpack.c.b16 %v1341, %v1340
  %1358 = vmatprep.subr.bf16.mxu0 0
  %1359 = vmatpush1.bf16.msra.mxu0 %v1349
  %1360 = vmatprep.subr.bf16.mxu0 0
  %1361 = vmatpush1.bf16.msra.mxu0 %v1348
  %1362 = vmatprep.subr.bf16.mxu0 0
  %1363 = vmatpush1.bf16.msra.mxu0 %v1347
  %1364 = vmatprep.subr.bf16.mxu0 0
  %1365 = vmatpush1.bf16.msra.mxu0 %v1346
  %1366 = vmatprep.subr.bf16.mxu0 0
  %1367 = vmatpush1.bf16.msra.mxu0 %v1345
  %1368 = vmatprep.subr.bf16.mxu0 0
  %1369 = vmatpush1.bf16.msra.mxu0 %v1344
  %1370 = vmatprep.subr.bf16.mxu0 0
  %1371 = vmatpush1.bf16.msra.mxu0 %v1343
  %1372 = vmatprep.subr.bf16.mxu0 0
  %1373 = vmatpush1.bf16.msra.mxu0 %v1342
  %1374 = vmatprep.subr.bf16.mxu0 0
  %1375 = vmatpush2.bf16.msra.mxu0 0
  %1376 = vmatprep.subr.bf16.mxu0 0
  %1377 = vmatpush2.bf16.msra.mxu0 0
  %1378 = vmatprep.subr.bf16.mxu0 0
  %1379 = vmatpush2.bf16.msra.mxu0 0
  %1380 = vmatprep.subr.bf16.mxu0 0
  %1381 = vmatpush2.bf16.msra.mxu0 0
  %1382 = vmatprep.subr.bf16.mxu0 0
  %1383 = vmatpush2.bf16.msra.mxu0 0
  %1384 = vmatprep.subr.bf16.mxu0 0
  %1385 = vmatpush2.bf16.msra.mxu0 0
  %1386 = vmatprep.subr.bf16.mxu0 0
  %1387 = vmatpush2.bf16.msra.mxu0 0
  %1388 = vmatprep.subr.bf16.mxu0 0
  %1389 = vmatpush2.bf16.msra.mxu0 0
  %1390 = vmatprep.mubr.bf16.mxu0 0
  %1391 = vmatmul.mubr.bf16.gmra.mxu0 %v1290
  %v1392 = vpop.f32.mrf.mxu0
  %v1393 = vadd.f32 0.0, %v1392
  %v1394 = vpop.f32.mrf.mxu0
  %v1395 = vpop.f32.mrf.mxu0
  %v1396 = vadd.f32 0.0, %v1395
  %v1397 = vpop.f32.mrf.mxu0
  %1398 = vmatprep.mubr.bf16.mxu0 0
  %1399 = vmatmul.mubr.bf16.gmra.mxu0 %v1291
  %v1400 = vpop.f32.mrf.mxu0
  %v1401 = vpop.f32.mrf.mxu0
  %v1402 = vpop.f32.mrf.mxu0
  %v1403 = vadd.f32 0.0, %v1402
  %v1404 = vpop.f32.mrf.mxu0
  %1405 = vmatprep.mubr.bf16.mxu0 0
  %1406 = vmatmul.mubr.bf16.gmra.mxu0 %v1292
  %v1407 = vpop.f32.mrf.mxu0
  %v1408 = vadd.f32 0.0, %v1407
  %v1409 = vpop.f32.mrf.mxu0
  %v1410 = vpop.f32.mrf.mxu0
  %v1411 = vpop.f32.mrf.mxu0
  %1412 = vdwg.mxu0
  %v1413 = vadd.f32 %v1265, %v1393
  %v1414 = vadd.f32 %v1268, %v1396
  %v1415 = vadd.f32 %v1275, %v1403
  %v1416 = vadd.f32 %v1280, %v1408
  %v1417 = vld [vmem:[#allocation2 + $0x3] sm:$0xff]
  %v1418 = vld [vmem:[#allocation2 + $0xb] sm:$0xff]
  %v1419 = vld [vmem:[#allocation2 + $0x13] sm:$0xff]
  %v1420 = vld [vmem:[#allocation2 + $0x1b] sm:$0xff]
  %v1421 = vld [vmem:[#allocation2 + $0x23] sm:$0xff]
  %v1422 = vpack.c.bf16 %v1418, %v1417
  %v1423 = vpack.c.bf16 %v1420, %v1419
  %v1424 = vpack.c.bf16 %v1421, %v1421
  %s1425 = scalar_lea.vmem %s2, 192
  %v1426 = vld [vmem:[%s1425] sm:$0xf]
  %v1427 = vld [vmem:[%s1425 + $0x4] sm:$0xf]
  %v1428 = vld [vmem:[%s1425 + $0x8] sm:$0xf]
  %v1429 = vld [vmem:[%s1425 + $0xc] sm:$0xf]
  %v1430 = vld [vmem:[%s1425 + $0x10] sm:$0xf]
  %v1431 = vld [vmem:[%s1425 + $0x14] sm:$0xf]
  %v1432 = vld [vmem:[%s1425 + $0x18] sm:$0xf]
  %v1433 = vld [vmem:[%s1425 + $0x1c] sm:$0xf]
  %v1434 = vld [vmem:[%s1425 + $0x20] sm:$0xf]
  %v1435 = vld [vmem:[%s1425 + $0x24] sm:$0xf]
  %v1436 = vld [vmem:[%s1425 + $0x28] sm:$0xf]
  %v1437 = vld [vmem:[%s1425 + $0x2c] sm:$0xf]
  %v1438 = vld [vmem:[%s1425 + $0x30] sm:$0xf]
  %v1439 = vld [vmem:[%s1425 + $0x34] sm:$0xf]
  %v1440 = vld [vmem:[%s1425 + $0x38] sm:$0xf]
  %v1441 = vld [vmem:[%s1425 + $0x3c] sm:$0xf]
  %v1458 = vunpack.c.l.b16 %v1426
  %v1459 = vunpack.c.l.b16 %v1427
  %v1460 = vunpack.c.l.b16 %v1428
  %v1461 = vunpack.c.l.b16 %v1429
  %v1462 = vunpack.c.l.b16 %v1430
  %v1463 = vunpack.c.l.b16 %v1431
  %v1464 = vunpack.c.l.b16 %v1432
  %v1465 = vunpack.c.l.b16 %v1433
  %v1466 = vunpack.c.l.b16 %v1434
  %v1467 = vunpack.c.l.b16 %v1435
  %v1468 = vunpack.c.l.b16 %v1436
  %v1469 = vunpack.c.l.b16 %v1437
  %v1470 = vunpack.c.l.b16 %v1438
  %v1471 = vunpack.c.l.b16 %v1439
  %v1472 = vunpack.c.l.b16 %v1440
  %v1473 = vunpack.c.l.b16 %v1441
  %v1474 = vpack.c.b16 %v1459, %v1458
  %v1475 = vpack.c.b16 %v1461, %v1460
  %v1476 = vpack.c.b16 %v1463, %v1462
  %v1477 = vpack.c.b16 %v1465, %v1464
  %v1478 = vpack.c.b16 %v1467, %v1466
  %v1479 = vpack.c.b16 %v1469, %v1468
  %v1480 = vpack.c.b16 %v1471, %v1470
  %v1481 = vpack.c.b16 %v1473, %v1472
  %1490 = vmatprep.subr.bf16.mxu0 0
  %1491 = vmatpush1.bf16.msra.mxu0 %v1481
  %1492 = vmatprep.subr.bf16.mxu0 0
  %1493 = vmatpush1.bf16.msra.mxu0 %v1480
  %1494 = vmatprep.subr.bf16.mxu0 0
  %1495 = vmatpush1.bf16.msra.mxu0 %v1479
  %1496 = vmatprep.subr.bf16.mxu0 0
  %1497 = vmatpush1.bf16.msra.mxu0 %v1478
  %1498 = vmatprep.subr.bf16.mxu0 0
  %1499 = vmatpush1.bf16.msra.mxu0 %v1477
  %1500 = vmatprep.subr.bf16.mxu0 0
  %1501 = vmatpush1.bf16.msra.mxu0 %v1476
  %1502 = vmatprep.subr.bf16.mxu0 0
  %1503 = vmatpush1.bf16.msra.mxu0 %v1475
  %1504 = vmatprep.subr.bf16.mxu0 0
  %1505 = vmatpush1.bf16.msra.mxu0 %v1474
  %1506 = vmatprep.subr.bf16.mxu0 0
  %1507 = vmatpush2.bf16.msra.mxu0 0
  %1508 = vmatprep.subr.bf16.mxu0 0
  %1509 = vmatpush2.bf16.msra.mxu0 0
  %1510 = vmatprep.subr.bf16.mxu0 0
  %1511 = vmatpush2.bf16.msra.mxu0 0
  %1512 = vmatprep.subr.bf16.mxu0 0
  %1513 = vmatpush2.bf16.msra.mxu0 0
  %1514 = vmatprep.subr.bf16.mxu0 0
  %1515 = vmatpush2.bf16.msra.mxu0 0
  %1516 = vmatprep.subr.bf16.mxu0 0
  %1517 = vmatpush2.bf16.msra.mxu0 0
  %1518 = vmatprep.subr.bf16.mxu0 0
  %1519 = vmatpush2.bf16.msra.mxu0 0
  %1520 = vmatprep.subr.bf16.mxu0 0
  %1521 = vmatpush2.bf16.msra.mxu0 0
  %1522 = vmatprep.mubr.bf16.mxu0 0
  %1523 = vmatmul.mubr.bf16.gmra.mxu0 %v1422
  %v1524 = vpop.f32.mrf.mxu0
  %v1525 = vadd.f32 0.0, %v1524
  %v1526 = vpop.f32.mrf.mxu0
  %v1527 = vpop.f32.mrf.mxu0
  %v1528 = vadd.f32 0.0, %v1527
  %v1529 = vpop.f32.mrf.mxu0
  %1530 = vmatprep.mubr.bf16.mxu0 0
  %1531 = vmatmul.mubr.bf16.gmra.mxu0 %v1423
  %v1532 = vpop.f32.mrf.mxu0
  %v1533 = vpop.f32.mrf.mxu0
  %v1534 = vpop.f32.mrf.mxu0
  %v1535 = vadd.f32 0.0, %v1534
  %v1536 = vpop.f32.mrf.mxu0
  %1537 = vmatprep.mubr.bf16.mxu0 0
  %1538 = vmatmul.mubr.bf16.gmra.mxu0 %v1424
  %v1539 = vpop.f32.mrf.mxu0
  %v1540 = vadd.f32 0.0, %v1539
  %v1541 = vpop.f32.mrf.mxu0
  %v1542 = vpop.f32.mrf.mxu0
  %v1543 = vpop.f32.mrf.mxu0
  %1544 = vdwg.mxu0
  %v1545 = vadd.f32 %v1413, %v1525
  %v1546 = vadd.f32 %v1414, %v1528
  %v1547 = vadd.f32 %v1415, %v1535
  %v1548 = vadd.f32 %v1416, %v1540
  %v1549 = vld [vmem:[#allocation2 + $0x4] sm:$0xff]
  %v1550 = vld [vmem:[#allocation2 + $0xc] sm:$0xff]
  %v1551 = vld [vmem:[#allocation2 + $0x14] sm:$0xff]
  %v1552 = vld [vmem:[#allocation2 + $0x1c] sm:$0xff]
  %v1553 = vld [vmem:[#allocation2 + $0x24] sm:$0xff]
  %v1554 = vpack.c.bf16 %v1550, %v1549
  %v1555 = vpack.c.bf16 %v1552, %v1551
  %v1556 = vpack.c.bf16 %v1553, %v1553
  %s1557 = scalar_lea.vmem %s2, 256
  %v1558 = vld [vmem:[%s1557] sm:$0xf]
  %v1559 = vld [vmem:[%s1557 + $0x4] sm:$0xf]
  %v1560 = vld [vmem:[%s1557 + $0x8] sm:$0xf]
  %v1561 = vld [vmem:[%s1557 + $0xc] sm:$0xf]
  %v1562 = vld [vmem:[%s1557 + $0x10] sm:$0xf]
  %v1563 = vld [vmem:[%s1557 + $0x14] sm:$0xf]
  %v1564 = vld [vmem:[%s1557 + $0x18] sm:$0xf]
  %v1565 = vld [vmem:[%s1557 + $0x1c] sm:$0xf]
  %v1566 = vld [vmem:[%s1557 + $0x20] sm:$0xf]
  %v1567 = vld [vmem:[%s1557 + $0x24] sm:$0xf]
  %v1568 = vld [vmem:[%s1557 + $0x28] sm:$0xf]
  %v1569 = vld [vmem:[%s1557 + $0x2c] sm:$0xf]
  %v1570 = vld [vmem:[%s1557 + $0x30] sm:$0xf]
  %v1571 = vld [vmem:[%s1557 + $0x34] sm:$0xf]
  %v1572 = vld [vmem:[%s1557 + $0x38] sm:$0xf]
  %v1573 = vld [vmem:[%s1557 + $0x3c] sm:$0xf]
  %v1590 = vunpack.c.l.b16 %v1558
  %v1591 = vunpack.c.l.b16 %v1559
  %v1592 = vunpack.c.l.b16 %v1560
  %v1593 = vunpack.c.l.b16 %v1561
  %v1594 = vunpack.c.l.b16 %v1562
  %v1595 = vunpack.c.l.b16 %v1563
  %v1596 = vunpack.c.l.b16 %v1564
  %v1597 = vunpack.c.l.b16 %v1565
  %v1598 = vunpack.c.l.b16 %v1566
  %v1599 = vunpack.c.l.b16 %v1567
  %v1600 = vunpack.c.l.b16 %v1568
  %v1601 = vunpack.c.l.b16 %v1569
  %v1602 = vunpack.c.l.b16 %v1570
  %v1603 = vunpack.c.l.b16 %v1571
  %v1604 = vunpack.c.l.b16 %v1572
  %v1605 = vunpack.c.l.b16 %v1573
  %v1606 = vpack.c.b16 %v1591, %v1590
  %v1607 = vpack.c.b16 %v1593, %v1592
  %v1608 = vpack.c.b16 %v1595, %v1594
  %v1609 = vpack.c.b16 %v1597, %v1596
  %v1610 = vpack.c.b16 %v1599, %v1598
  %v1611 = vpack.c.b16 %v1601, %v1600
  %v1612 = vpack.c.b16 %v1603, %v1602
  %v1613 = vpack.c.b16 %v1605, %v1604
  %1622 = vmatprep.subr.bf16.mxu0 0
  %1623 = vmatpush1.bf16.msra.mxu0 %v1613
  %1624 = vmatprep.subr.bf16.mxu0 0
  %1625 = vmatpush1.bf16.msra.mxu0 %v1612
  %1626 = vmatprep.subr.bf16.mxu0 0
  %1627 = vmatpush1.bf16.msra.mxu0 %v1611
  %1628 = vmatprep.subr.bf16.mxu0 0
  %1629 = vmatpush1.bf16.msra.mxu0 %v1610
  %1630 = vmatprep.subr.bf16.mxu0 0
  %1631 = vmatpush1.bf16.msra.mxu0 %v1609
  %1632 = vmatprep.subr.bf16.mxu0 0
  %1633 = vmatpush1.bf16.msra.mxu0 %v1608
  %1634 = vmatprep.subr.bf16.mxu0 0
  %1635 = vmatpush1.bf16.msra.mxu0 %v1607
  %1636 = vmatprep.subr.bf16.mxu0 0
  %1637 = vmatpush1.bf16.msra.mxu0 %v1606
  %1638 = vmatprep.subr.bf16.mxu0 0
  %1639 = vmatpush2.bf16.msra.mxu0 0
  %1640 = vmatprep.subr.bf16.mxu0 0
  %1641 = vmatpush2.bf16.msra.mxu0 0
  %1642 = vmatprep.subr.bf16.mxu0 0
  %1643 = vmatpush2.bf16.msra.mxu0 0
  %1644 = vmatprep.subr.bf16.mxu0 0
  %1645 = vmatpush2.bf16.msra.mxu0 0
  %1646 = vmatprep.subr.bf16.mxu0 0
  %1647 = vmatpush2.bf16.msra.mxu0 0
  %1648 = vmatprep.subr.bf16.mxu0 0
  %1649 = vmatpush2.bf16.msra.mxu0 0
  %1650 = vmatprep.subr.bf16.mxu0 0
  %1651 = vmatpush2.bf16.msra.mxu0 0
  %1652 = vmatprep.subr.bf16.mxu0 0
  %1653 = vmatpush2.bf16.msra.mxu0 0
  %1654 = vmatprep.mubr.bf16.mxu0 0
  %1655 = vmatmul.mubr.bf16.gmra.mxu0 %v1554
  %v1656 = vpop.f32.mrf.mxu0
  %v1657 = vadd.f32 0.0, %v1656
  %v1658 = vpop.f32.mrf.mxu0
  %v1659 = vpop.f32.mrf.mxu0
  %v1660 = vadd.f32 0.0, %v1659
  %v1661 = vpop.f32.mrf.mxu0
  %1662 = vmatprep.mubr.bf16.mxu0 0
  %1663 = vmatmul.mubr.bf16.gmra.mxu0 %v1555
  %v1664 = vpop.f32.mrf.mxu0
  %v1665 = vpop.f32.mrf.mxu0
  %v1666 = vpop.f32.mrf.mxu0
  %v1667 = vadd.f32 0.0, %v1666
  %v1668 = vpop.f32.mrf.mxu0
  %1669 = vmatprep.mubr.bf16.mxu0 0
  %1670 = vmatmul.mubr.bf16.gmra.mxu0 %v1556
  %v1671 = vpop.f32.mrf.mxu0
  %v1672 = vadd.f32 0.0, %v1671
  %v1673 = vpop.f32.mrf.mxu0
  %v1674 = vpop.f32.mrf.mxu0
  %v1675 = vpop.f32.mrf.mxu0
  %1676 = vdwg.mxu0
  %v1677 = vadd.f32 %v1545, %v1657
  %v1678 = vadd.f32 %v1546, %v1660
  %v1679 = vadd.f32 %v1547, %v1667
  %v1680 = vadd.f32 %v1548, %v1672
  %v1681 = vadd.f32 %v1677, %v1678
  %v1682 = vadd.f32 %v1681, %v1679
  %v1683 = vadd.f32 %v1682, %v1680
  %v1684 = vrot.slane %v1683, 4
  %v1685 = vadd.f32 %v1683, %v1684
  %v1686 = vrot.slane %v1685, 2
  %v1687 = vadd.f32 %v1685, %v1686
  %v1688 = vrot.slane %v1687, 1
  %v1689 = vadd.f32 %v1687, %v1688
  %1690 = vmatprep.subr.mxu0 0.0
  %1691 = vmatpush1.msra.mxu0 %v289
  %1692 = vmatprep.subr.mxu0 0.0
  %1693 = vmatpush1.msra.mxu0 %v288
  %1694 = vmatprep.subr.mxu0 0.0
  %1695 = vmatpush1.msra.mxu0 %v287
  %1696 = vmatprep.subr.mxu0 0.0
  %1697 = vmatpush1.msra.mxu0 %v286
  %1698 = vmatprep.subr.mxu0 0.0
  %1699 = vmatpush1.msra.mxu0 %v285
  %1700 = vmatprep.subr.mxu0 0.0
  %1701 = vmatpush1.msra.mxu0 %v284
  %1702 = vmatprep.subr.mxu0 0.0
  %1703 = vmatpush1.msra.mxu0 %v283
  %1704 = vmatprep.subr.mxu0 0.0
  %1705 = vmatpush1.msra.mxu0 %v282
  %1706 = vmatprep.subr.mxu0 0.0
  %1707 = vmatpush1.msra.mxu0 %v281
  %1708 = vmatprep.subr.mxu0 0.0
  %1709 = vmatpush1.msra.mxu0 %v280
  %1710 = vmatprep.subr.mxu0 0.0
  %1711 = vmatpush1.msra.mxu0 %v279
  %1712 = vmatprep.subr.mxu0 0.0
  %1713 = vmatpush1.msra.mxu0 %v278
  %1714 = vmatprep.subr.mxu0 0.0
  %1715 = vmatpush1.msra.mxu0 %v277
  %1716 = vmatprep.subr.mxu0 0.0
  %1717 = vmatpush1.msra.mxu0 %v276
  %1718 = vmatprep.subr.mxu0 0.0
  %1719 = vmatpush1.msra.mxu0 %v275
  %1720 = vmatprep.subr.mxu0 0.0
  %1721 = vmatpush1.msra.mxu0 %v274
  %1722 = vmatprep.subr.mxu0 0.0
  %1723 = vmatpush2.msra.mxu0 0.0
  %1724 = vmatprep.subr.mxu0 0.0
  %1725 = vmatpush2.msra.mxu0 0.0
  %1726 = vmatprep.subr.mxu0 0.0
  %1727 = vmatpush2.msra.mxu0 0.0
  %1728 = vmatprep.subr.mxu0 0.0
  %1729 = vmatpush2.msra.mxu0 0.0
  %1730 = vmatprep.subr.mxu0 0.0
  %1731 = vmatpush2.msra.mxu0 0.0
  %1732 = vmatprep.subr.mxu0 0.0
  %1733 = vmatpush2.msra.mxu0 0.0
  %1734 = vmatprep.subr.mxu0 0.0
  %1735 = vmatpush2.msra.mxu0 0.0
  %1736 = vmatprep.subr.mxu0 0.0
  %1737 = vmatpush2.msra.mxu0 0.0
  %1738 = vmatprep.subr.mxu0 0.0
  %1739 = vmatpush2.msra.mxu0 0.0
  %1740 = vmatprep.subr.mxu0 0.0
  %1741 = vmatpush2.msra.mxu0 0.0
  %1742 = vmatprep.subr.mxu0 0.0
  %1743 = vmatpush2.msra.mxu0 0.0
  %1744 = vmatprep.subr.mxu0 0.0
  %1745 = vmatpush2.msra.mxu0 0.0
  %1746 = vmatprep.subr.mxu0 0.0
  %1747 = vmatpush2.msra.mxu0 0.0
  %1748 = vmatprep.subr.mxu0 0.0
  %1749 = vmatpush2.msra.mxu0 0.0
  %1750 = vmatprep.subr.mxu0 0.0
  %1751 = vmatpush2.msra.mxu0 0.0
  %1752 = vmatprep.subr.mxu0 0.0
  %1753 = vmatpush2.msra.mxu0 0.0
  %1754 = vmatprep.mubr.f32.mxu0 0.0
  %1755 = vmatmul.mubr.f32.gmra.mxu0 %v1689
  %v1756 = vpop.f32.mrf.mxu0
  %v1757 = vadd.f32 0.0, %v1756
  %v1758 = vpop.f32.mrf.mxu0
  %1759 = vdwg.mxu0
  %v1760 = vmul.f32 %v1757, 0.001953125
  %v1761 = vlaneseq
  %v1762 = vshrl.u32 %v1761, 7
  %v1763 = vsub.s32 0, %v1762
  %v1764 = vrot.slane %v1760, %v1763
  %v1765 = vsub.f32 %v1677, %v1764
  %v1766 = vsub.f32 %v1678, %v1764
  %v1767 = vsub.f32 %v1679, %v1764
  %v1768 = vsub.f32 %v1680, %v1764
  %v1769 = vmul.f32 %v1765, %v1765
  %v1770 = vmul.f32 %v1766, %v1766
  %v1771 = vmul.f32 %v1767, %v1767
  %v1772 = vmul.f32 %v1768, %v1768
  %v1773 = vadd.f32 %v1769, %v1770
  %v1774 = vadd.f32 %v1773, %v1771
  %v1775 = vadd.f32 %v1774, %v1772
  %v1776 = vrot.slane %v1775, 4
  %v1777 = vadd.f32 %v1775, %v1776
  %v1778 = vrot.slane %v1777, 2
  %v1779 = vadd.f32 %v1777, %v1778
  %v1780 = vrot.slane %v1779, 1
  %v1781 = vadd.f32 %v1779, %v1780
  %1782 = vmatprep.subr.mxu0 0.0
  %1783 = vmatpush1.msra.mxu0 %v289
  %1784 = vmatprep.subr.mxu0 0.0
  %1785 = vmatpush1.msra.mxu0 %v288
  %1786 = vmatprep.subr.mxu0 0.0
  %1787 = vmatpush1.msra.mxu0 %v287
  %1788 = vmatprep.subr.mxu0 0.0
  %1789 = vmatpush1.msra.mxu0 %v286
  %1790 = vmatprep.subr.mxu0 0.0
  %1791 = vmatpush1.msra.mxu0 %v285
  %1792 = vmatprep.subr.mxu0 0.0
  %1793 = vmatpush1.msra.mxu0 %v284
  %1794 = vmatprep.subr.mxu0 0.0
  %1795 = vmatpush1.msra.mxu0 %v283
  %1796 = vmatprep.subr.mxu0 0.0
  %1797 = vmatpush1.msra.mxu0 %v282
  %1798 = vmatprep.subr.mxu0 0.0
  %1799 = vmatpush1.msra.mxu0 %v281
  %1800 = vmatprep.subr.mxu0 0.0
  %1801 = vmatpush1.msra.mxu0 %v280
  %1802 = vmatprep.subr.mxu0 0.0
  %1803 = vmatpush1.msra.mxu0 %v279
  %1804 = vmatprep.subr.mxu0 0.0
  %1805 = vmatpush1.msra.mxu0 %v278
  %1806 = vmatprep.subr.mxu0 0.0
  %1807 = vmatpush1.msra.mxu0 %v277
  %1808 = vmatprep.subr.mxu0 0.0
  %1809 = vmatpush1.msra.mxu0 %v276
  %1810 = vmatprep.subr.mxu0 0.0
  %1811 = vmatpush1.msra.mxu0 %v275
  %1812 = vmatprep.subr.mxu0 0.0
  %1813 = vmatpush1.msra.mxu0 %v274
  %1814 = vmatprep.subr.mxu0 0.0
  %1815 = vmatpush2.msra.mxu0 0.0
  %1816 = vmatprep.subr.mxu0 0.0
  %1817 = vmatpush2.msra.mxu0 0.0
  %1818 = vmatprep.subr.mxu0 0.0
  %1819 = vmatpush2.msra.mxu0 0.0
  %1820 = vmatprep.subr.mxu0 0.0
  %1821 = vmatpush2.msra.mxu0 0.0
  %1822 = vmatprep.subr.mxu0 0.0
  %1823 = vmatpush2.msra.mxu0 0.0
  %1824 = vmatprep.subr.mxu0 0.0
  %1825 = vmatpush2.msra.mxu0 0.0
  %1826 = vmatprep.subr.mxu0 0.0
  %1827 = vmatpush2.msra.mxu0 0.0
  %1828 = vmatprep.subr.mxu0 0.0
  %1829 = vmatpush2.msra.mxu0 0.0
  %1830 = vmatprep.subr.mxu0 0.0
  %1831 = vmatpush2.msra.mxu0 0.0
  %1832 = vmatprep.subr.mxu0 0.0
  %1833 = vmatpush2.msra.mxu0 0.0
  %1834 = vmatprep.subr.mxu0 0.0
  %1835 = vmatpush2.msra.mxu0 0.0
  %1836 = vmatprep.subr.mxu0 0.0
  %1837 = vmatpush2.msra.mxu0 0.0
  %1838 = vmatprep.subr.mxu0 0.0
  %1839 = vmatpush2.msra.mxu0 0.0
  %1840 = vmatprep.subr.mxu0 0.0
  %1841 = vmatpush2.msra.mxu0 0.0
  %1842 = vmatprep.subr.mxu0 0.0
  %1843 = vmatpush2.msra.mxu0 0.0
  %1844 = vmatprep.subr.mxu0 0.0
  %1845 = vmatpush2.msra.mxu0 0.0
  %1846 = vmatprep.mubr.f32.mxu0 0.0
  %1847 = vmatmul.mubr.f32.gmra.mxu0 %v1781
  %v1848 = vpop.f32.mrf.mxu0
  %v1849 = vadd.f32 0.0, %v1848
  %v1850 = vpop.f32.mrf.mxu0
  %1851 = vdwg.mxu0
  %v1852 = vmul.f32 %v1849, 0.001953125
  %v1853 = vadd.f32 %v1852, 1e-05
  %v1854 = vrsqrt.pop %v1853
  %v1856 = vrot.slane %v1854, 6
  %v1858 = vmul.f32 %v18, %v1856
  %v1859 = vlaneseq
  %v1860 = vshrl.u32 %v1859, 7
  %v1861 = vsub.s32 2, %v1860
  %v1862 = vrot.slane %v1858, %v1861
  %v1863 = vmul.f32 %v1765, %v1862
  %v1864 = vmul.f32 %v1766, %v1862
  %v1865 = vmul.f32 %v1767, %v1862
  %v1866 = vmul.f32 %v1768, %v1862
  %v1867 = vlaneseq
  %v1868 = vshrl.u32 %v1867, 7
  %v1869 = vsub.s32 3, %v1868
  %v1870 = vrot.slane %v18, %v1869
  %v1871 = vadd.f32 %v1863, %v1870
  %v1872 = vadd.f32 %v1864, %v1870
  %v1873 = vadd.f32 %v1865, %v1870
  %v1874 = vadd.f32 %v1866, %v1870
  %v1875 = vmax.f32 %v1871, 0.0
  %v1876 = vmax.f32 %v1872, 0.0
  %v1877 = vmax.f32 %v1873, 0.0
  %v1878 = vmax.f32 %v1874, 0.0
  %1879 = vst [vmem:[%s4] sm:$0xff] %v1875
  %1880 = vst [vmem:[%s4 + $0x8] sm:$0xff] %v1876
  %1881 = vst [vmem:[%s4 + $0x10] sm:$0xff] %v1877
  %1882 = vst [vmem:[%s4 + $0x18] sm:$0xff] %v1878
  // Predicated region
  $region18: #{one_step_conv_forward.1} parent=0 // pred_check
    _
  $region19: #{one_step_conv_forward.1} parent=0 // pred_check_branch
    %1884 = sbr.rel (0) target = $region21
  $region20: #{one_step_conv_forward.1} parent=0 // pred_region
    _
  $region21: #{one_step_conv_forward.1} parent=0 // pred_fallthru
    _
  // Predicated region
  $region22: #{one_step_conv_forward.1} parent=0 // pred_check
    _
  $region23: #{one_step_conv_forward.1} parent=0 // pred_check_branch
    %1886 = sbr.rel (0) target = $region25
  $region24: #{one_step_conv_forward.1} parent=0 // pred_region
    _
  $region25: #{one_step_conv_forward.1} parent=0 // pred_fallthru
    _

</llo_original>
